<compile_context>
chip_gen: v5e
topology: v5e:2x2
jax: 0.10.0
libtpu: 0.0.40
codegen_flags: <defaults>
</compile_context>

<pallas_src>
import jax
import jax.numpy as jnp
from jax.experimental import pallas as pl
from jax.experimental.pallas import tpu as pltpu

EPS = 1e-5
NEG_SLOPE = 0.02
LANE = 128
_VMEM_LIMIT = 32 * 1024 * 1024   # safe on v7x (64 MiB physical / 32 MiB scoped) and below


def _round_up(x, m):
    return (x + m - 1) // m * m


def encoder_layer(x_nchw, weight, gamma, beta, *, stride=2, padding=2,
                  pass2_rows=2048, vmem_limit_bytes=_VMEM_LIMIT):
    """Conv2d(stride, padding, bias=False) -> BatchNorm2d (training) -> LeakyReLU(0.02).

    x_nchw: (N, Cin, H, W) f32; weight: (Cout, Cin, KH, KW) f32 -> (N, Cout, Ho, Wo) f32.
    """
    N, Cin, H, W = x_nchw.shape
    Cout, Cin_w, KH, KW = weight.shape
    assert Cin == Cin_w
    s = stride
    Ho = (H + 2 * padding - KH) // s + 1
    Wo = (W + 2 * padding - KW) // s + 1

    # Lane-dense output channels; Wo padded to a sublane multiple so the on-chip
    # (Ho, wo_pad, Cin) -> (Ho*wo_pad, Cin) patch reshape is tile aligned (f32).
    c_pad = _round_up(Cout, LANE)
    wo_pad = _round_up(Wo, 8)
    mi_pad = Ho * wo_pad            # conv-output rows per image (padded)

    # -------- wrapper glue: pad + polyphase split (no im2col duplication in HBM) --------
    # TODO(synk): keep NHWC end-to-end across stacked encoder layers (and stage row slabs
    # via manual DMA for large images / large Cin) to drop this transpose/pad/split pass.
    x_nhwc = jnp.transpose(x_nchw, (0, 2, 3, 1)).astype(jnp.float32)
    x_sp = jnp.pad(x_nhwc, ((0, 0), (padding, padding), (padding, padding), (0, 0)))

    comps = []
    for ph in range(s):
        for pw in range(s):
            a_max = (KH - 1 - ph) // s
            b_max = (KW - 1 - pw) // s
            h_need = Ho + a_max
            w_need = wo_pad + b_max
            c = x_sp[:, ph::s, pw::s, :]
            c = c[:, :h_need, :w_need, :]
            pad_h = h_need - c.shape[1]
            pad_w = w_need - c.shape[2]
            if pad_h or pad_w:
                c = jnp.pad(c, ((0, 0), (0, pad_h), (0, pad_w), (0, 0)))
            comps.append(c)
    n_comp = len(comps)

    # PyTorch weight (Cout, Cin, KH, KW) -> per-tap (KH*KW, Cin, c_pad), VMEM-resident.
    w_taps = jnp.transpose(weight, (2, 3, 1, 0)).astype(jnp.float32)
    w_taps = jnp.pad(w_taps, ((0, 0), (0, 0), (0, 0), (0, c_pad - Cout)))
    w_taps = w_taps.reshape(KH * KW, Cin, c_pad)

    # -------- pass 1: implicit-GEMM conv + per-image BN partial statistics --------
    def conv_stats_kernel(*refs):
        comp_refs = refs[:n_comp]
        w_ref = refs[n_comp]
        y_ref, sum_ref, ssq_ref = refs[n_comp + 1:]

        acc = jnp.zeros((mi_pad, c_pad), jnp.float32)
        for kh in range(KH):
            ph, a = kh % s, kh // s
            for kw in range(KW):
                pw, b = kw % s, kw // s
                xp = comp_refs[ph * s + pw]
                win = xp[a:a + Ho, b:b + wo_pad, :]        # stride-1 shifted window
                patch = win.reshape(Ho * wo_pad, Cin)
                acc = acc + jnp.dot(patch, w_ref[kh * KW + kw],
                                    preferred_element_type=jnp.float32)

        # bf16 intermediate -> halves the HBM writeback / re-read between the two passes.
        y_ref[...] = acc.astype(jnp.bfloat16)

        if wo_pad > Wo:  # mask padded output columns so training-mode stats stay exact
            row = jax.lax.broadcasted_iota(jnp.int32, (mi_pad, 1), 0)
            acc_s = jnp.where(row % wo_pad < Wo, acc, 0.0)
        else:
            acc_s = acc
        sum_ref[...] = jnp.broadcast_to(
            jnp.sum(acc_s, axis=0, keepdims=True), sum_ref.shape)
        ssq_ref[...] = jnp.broadcast_to(
            jnp.sum(acc_s * acc_s, axis=0, keepdims=True), ssq_ref.shape)

    comp_specs = [pl.BlockSpec((None,) + c.shape[1:], lambda n: (n, 0, 0, 0))
                  for c in comps]
    w_spec = pl.BlockSpec((KH * KW, Cin, c_pad), lambda n: (0, 0, 0))  # resident weight

    flops1 = 2 * N * mi_pad * c_pad * (KH * KW * Cin)
    bytes1 = (sum(int(c.size) for c in comps) * 4 + int(w_taps.size) * 4
              + N * mi_pad * c_pad * 2 + 2 * N * 8 * c_pad * 4)

    y, part_sum, part_ssq = pl.pallas_call(
        conv_stats_kernel,
        out_shape=(
            jax.ShapeDtypeStruct((N, mi_pad, c_pad), jnp.bfloat16),
            jax.ShapeDtypeStruct((N, 8, c_pad), jnp.float32),
            jax.ShapeDtypeStruct((N, 8, c_pad), jnp.float32),
        ),
        grid_spec=pltpu.PrefetchScalarGridSpec(
            num_scalar_prefetch=0,
            grid=(N,),
            in_specs=comp_specs + [w_spec],
            out_specs=(
                pl.BlockSpec((None, mi_pad, c_pad), lambda n: (n, 0, 0)),
                pl.BlockSpec((None, 8, c_pad), lambda n: (n, 0, 0)),
                pl.BlockSpec((None, 8, c_pad), lambda n: (n, 0, 0)),
            ),
        ),
        compiler_params=pltpu.CompilerParams(
            dimension_semantics=("parallel",),
            vmem_limit_bytes=vmem_limit_bytes,
        ),
        cost_estimate=pl.CostEstimate(
            flops=flops1, transcendentals=0, bytes_accessed=bytes1),
    )(*comps, w_taps)

    # -------- tiny per-channel reduction: exact global BN stats (Chan merge) --------
    cnt = float(Ho * Wo)                         # valid rows per image
    sum_i = part_sum[:, 0, :]                    # (N, c_pad)
    ssq_i = part_ssq[:, 0, :]
    mean_i = sum_i / cnt
    m2_i = ssq_i - sum_i * mean_i                # per-image sum of squared deviations
    mean = jnp.sum(sum_i, axis=0) / (cnt * N)
    m2 = jnp.sum(m2_i, axis=0) + cnt * jnp.sum((mean_i - mean) ** 2, axis=0)
    var = jnp.maximum(m2 / (cnt * N), 0.0)       # biased variance (PyTorch BN normalize)

    gamma_p = jnp.pad(gamma.astype(jnp.float32), (0, c_pad - Cout))
    beta_p = jnp.pad(beta.astype(jnp.float32), (0, c_pad - Cout))
    scale_v = gamma_p * jax.lax.rsqrt(var + EPS)
    scale = scale_v.reshape(1, c_pad)
    shift = (beta_p - mean * scale_v).reshape(1, c_pad)

    # -------- pass 2: normalize + LeakyReLU on large lane-dense row blocks --------
    rows = N * mi_pad
    k = max(1, min(N, pass2_rows // mi_pad))
    while N % k:
        k -= 1
    m2_tile = k * mi_pad
    y2 = y.reshape(rows, c_pad)

    def bn_lrelu_kernel(y_ref, scale_ref, shift_ref, o_ref):
        z = y_ref[...].astype(jnp.float32) * scale_ref[...] + shift_ref[...]
        o_ref[...] = jnp.where(z >= 0.0, z, NEG_SLOPE * z)

    bytes2 = rows * c_pad * (2 + 4) + 2 * c_pad * 4
    out2 = pl.pallas_call(
        bn_lrelu_kernel,
        out_shape=jax.ShapeDtypeStruct((rows, c_pad), jnp.float32),
        grid_spec=pltpu.PrefetchScalarGridSpec(
            num_scalar_prefetch=0,
            grid=(rows // m2_tile,),
            in_specs=[
                pl.BlockSpec((m2_tile, c_pad), lambda i: (i, 0)),
                pl.BlockSpec((1, c_pad), lambda i: (0, 0)),
                pl.BlockSpec((1, c_pad), lambda i: (0, 0)),
            ],
            out_specs=pl.BlockSpec((m2_tile, c_pad), lambda i: (i, 0)),
        ),
        compiler_params=pltpu.CompilerParams(
            dimension_semantics=("parallel",),
            vmem_limit_bytes=vmem_limit_bytes,
        ),
        cost_estimate=pl.CostEstimate(
            flops=4 * rows * c_pad, transcendentals=0, bytes_accessed=bytes2),
    )(y2, scale, shift)

    out = out2.reshape(N, Ho, wo_pad, c_pad)[:, :, :Wo, :Cout]
    # TODO(synk): keep NHWC between stacked layers; this transpose only serves the NCHW API.
    return jnp.transpose(out, (0, 3, 1, 2))


def _reference(x, weight, gamma, beta):
    """Pure-JAX reference of the same forward (sanity check)."""
    y = jax.lax.conv_general_dilated(
        x, weight, window_strides=(2, 2), padding=((2, 2), (2, 2)),
        dimension_numbers=("NCHW", "OIHW", "NCHW"))
    mean = jnp.mean(y, axis=(0, 2, 3), keepdims=True)
    var = jnp.mean((y - mean) ** 2, axis=(0, 2, 3), keepdims=True)
    y = (y - mean) * jax.lax.rsqrt(var + EPS)
    y = y * gamma.reshape(1, -1, 1, 1) + beta.reshape(1, -1, 1, 1)
    return jnp.where(y >= 0.0, y, NEG_SLOPE * y)


if __name__ == "__main__":
    # Small shapes consistent with the module: N=2, Cin=4, H=W=16, Cout=8, 5x5 kernel.
    N, Cin, H, W, Cout = 2, 4, 16, 16, 8
    KH = KW = 5

    key = jax.random.PRNGKey(0)
    kx, kw_key, kg, kb = jax.random.split(key, 4)
    x = jax.random.normal(kx, (N, Cin, H, W), dtype=jnp.float32)
    weight = jax.random.normal(kw_key, (Cout, Cin, KH, KW), dtype=jnp.float32) * 0.1
    gamma = 1.0 + 0.1 * jax.random.normal(kg, (Cout,), dtype=jnp.float32)
    beta = 0.1 * jax.random.normal(kb, (Cout,), dtype=jnp.float32)

    fwd = jax.jit(encoder_layer)
    out = jax.block_until_ready(fwd(x, weight, gamma, beta))

    ref = jax.block_until_ready(_reference(x, weight, gamma, beta))
    assert out.shape == (N, Cout, H // 2, W // 2), out.shape
    max_err = float(jnp.max(jnp.abs(out - ref)))
    assert jnp.allclose(out, ref, atol=3e-2, rtol=3e-2), max_err

    print("KERNEL_OK")
</pallas_src>

<mosaic_0001>
module attributes {stable_mosaic.version = 11 : i64} {
  func.func @conv_stats_kernel(%arg0: i32, %arg1: memref<1x10x10x4xf32, #tpu.memory_space<vmem>>, %arg2: memref<1x10x9x4xf32, #tpu.memory_space<vmem>>, %arg3: memref<1x9x10x4xf32, #tpu.memory_space<vmem>>, %arg4: memref<1x9x9x4xf32, #tpu.memory_space<vmem>>, %arg5: memref<25x4x128xf32, #tpu.memory_space<vmem>>, %arg6: memref<1x64x128xbf16, #tpu.memory_space<vmem>>, %arg7: memref<1x8x128xf32, #tpu.memory_space<vmem>>, %arg8: memref<1x8x128xf32, #tpu.memory_space<vmem>>) attributes {dimension_semantics = [#tpu.dimension_semantics<parallel>], iteration_bounds = array<i64: 2>, scalar_prefetch = 0 : i64, scratch_operands = 0 : i64, tpu.core_type = #tpu.core_type<tc>, window_params = [{transform_indices = @transform_0, window_bounds = array<i64: 1, 10, 10, 4>}, {transform_indices = @transform_1, window_bounds = array<i64: 1, 10, 9, 4>}, {transform_indices = @transform_2, window_bounds = array<i64: 1, 9, 10, 4>}, {transform_indices = @transform_3, window_bounds = array<i64: 1, 9, 9, 4>}, {pipeline_mode = #tpu.pipeline_mode<synchronous>, transform_indices = @transform_4, window_bounds = array<i64: 25, 4, 128>}, {transform_indices = @transform_5, window_bounds = array<i64: 1, 64, 128>}, {transform_indices = @transform_6, window_bounds = array<i64: 1, 8, 128>}, {transform_indices = @transform_7, window_bounds = array<i64: 1, 8, 128>}]} {
    %cst = arith.constant 0.000000e+00 : f32
    %0 = vector.broadcast %cst : f32 to vector<64x128xf32>
    %c0 = arith.constant 0 : index
    %c0_0 = arith.constant 0 : index
    %c0_1 = arith.constant 0 : index
    %c0_2 = arith.constant 0 : index
    %1 = vector.load %arg1[%c0, %c0_0, %c0_1, %c0_2] : memref<1x10x10x4xf32, #tpu.memory_space<vmem>>, vector<1x8x8x4xf32>
    %2 = vector.shape_cast %1 : vector<1x8x8x4xf32> to vector<8x8x4xf32>
    %3 = vector.shape_cast %2 : vector<8x8x4xf32> to vector<64x4xf32>
    %c0_3 = arith.constant 0 : index
    %c0_4 = arith.constant 0 : index
    %c0_5 = arith.constant 0 : index
    %4 = vector.load %arg5[%c0_3, %c0_4, %c0_5] : memref<25x4x128xf32, #tpu.memory_space<vmem>>, vector<1x4x128xf32>
    %5 = vector.shape_cast %4 : vector<1x4x128xf32> to vector<4x128xf32>
    %cst_6 = arith.constant dense<0.000000e+00> : vector<64x128xf32>
    %6 = tpu.matmul %3, %5, %cst_6 {dimension_numbers = #tpu.dot_dimension_numbers<[1], [0], [0], [1], [0, 0, 1, 1], [], []>} : vector<64x4xf32>, vector<4x128xf32>, vector<64x128xf32> -> vector<64x128xf32>
    %7 = arith.addf %0, %6 : vector<64x128xf32>
    %c0_7 = arith.constant 0 : index
    %c0_8 = arith.constant 0 : index
    %c0_9 = arith.constant 0 : index
    %c0_10 = arith.constant 0 : index
    %8 = vector.load %arg2[%c0_7, %c0_8, %c0_9, %c0_10] : memref<1x10x9x4xf32, #tpu.memory_space<vmem>>, vector<1x8x8x4xf32>
    %9 = vector.shape_cast %8 : vector<1x8x8x4xf32> to vector<8x8x4xf32>
    %10 = vector.shape_cast %9 : vector<8x8x4xf32> to vector<64x4xf32>
    %c1 = arith.constant 1 : index
    %c0_11 = arith.constant 0 : index
    %c0_12 = arith.constant 0 : index
    %11 = vector.load %arg5[%c1, %c0_11, %c0_12] : memref<25x4x128xf32, #tpu.memory_space<vmem>>, vector<1x4x128xf32>
    %12 = vector.shape_cast %11 : vector<1x4x128xf32> to vector<4x128xf32>
    %cst_13 = arith.constant dense<0.000000e+00> : vector<64x128xf32>
    %13 = tpu.matmul %10, %12, %cst_13 {dimension_numbers = #tpu.dot_dimension_numbers<[1], [0], [0], [1], [0, 0, 1, 1], [], []>} : vector<64x4xf32>, vector<4x128xf32>, vector<64x128xf32> -> vector<64x128xf32>
    %14 = arith.addf %7, %13 : vector<64x128xf32>
    %c0_14 = arith.constant 0 : index
    %c0_15 = arith.constant 0 : index
    %c1_16 = arith.constant 1 : index
    %c0_17 = arith.constant 0 : index
    %15 = vector.load %arg1[%c0_14, %c0_15, %c1_16, %c0_17] : memref<1x10x10x4xf32, #tpu.memory_space<vmem>>, vector<1x8x8x4xf32>
    %16 = vector.shape_cast %15 : vector<1x8x8x4xf32> to vector<8x8x4xf32>
    %17 = vector.shape_cast %16 : vector<8x8x4xf32> to vector<64x4xf32>
    %c2 = arith.constant 2 : index
    %c0_18 = arith.constant 0 : index
    %c0_19 = arith.constant 0 : index
    %18 = vector.load %arg5[%c2, %c0_18, %c0_19] : memref<25x4x128xf32, #tpu.memory_space<vmem>>, vector<1x4x128xf32>
    %19 = vector.shape_cast %18 : vector<1x4x128xf32> to vector<4x128xf32>
    %cst_20 = arith.constant dense<0.000000e+00> : vector<64x128xf32>
    %20 = tpu.matmul %17, %19, %cst_20 {dimension_numbers = #tpu.dot_dimension_numbers<[1], [0], [0], [1], [0, 0, 1, 1], [], []>} : vector<64x4xf32>, vector<4x128xf32>, vector<64x128xf32> -> vector<64x128xf32>
    %21 = arith.addf %14, %20 : vector<64x128xf32>
    %c0_21 = arith.constant 0 : index
    %c0_22 = arith.constant 0 : index
    %c1_23 = arith.constant 1 : index
    %c0_24 = arith.constant 0 : index
    %22 = vector.load %arg2[%c0_21, %c0_22, %c1_23, %c0_24] : memref<1x10x9x4xf32, #tpu.memory_space<vmem>>, vector<1x8x8x4xf32>
    %23 = vector.shape_cast %22 : vector<1x8x8x4xf32> to vector<8x8x4xf32>
    %24 = vector.shape_cast %23 : vector<8x8x4xf32> to vector<64x4xf32>
    %c3 = arith.constant 3 : index
    %c0_25 = arith.constant 0 : index
    %c0_26 = arith.constant 0 : index
    %25 = vector.load %arg5[%c3, %c0_25, %c0_26] : memref<25x4x128xf32, #tpu.memory_space<vmem>>, vector<1x4x128xf32>
    %26 = vector.shape_cast %25 : vector<1x4x128xf32> to vector<4x128xf32>
    %cst_27 = arith.constant dense<0.000000e+00> : vector<64x128xf32>
    %27 = tpu.matmul %24, %26, %cst_27 {dimension_numbers = #tpu.dot_dimension_numbers<[1], [0], [0], [1], [0, 0, 1, 1], [], []>} : vector<64x4xf32>, vector<4x128xf32>, vector<64x128xf32> -> vector<64x128xf32>
    %28 = arith.addf %21, %27 : vector<64x128xf32>
    %c0_28 = arith.constant 0 : index
    %c0_29 = arith.constant 0 : index
    %c2_30 = arith.constant 2 : index
    %c0_31 = arith.constant 0 : index
    %29 = vector.load %arg1[%c0_28, %c0_29, %c2_30, %c0_31] : memref<1x10x10x4xf32, #tpu.memory_space<vmem>>, vector<1x8x8x4xf32>
    %30 = vector.shape_cast %29 : vector<1x8x8x4xf32> to vector<8x8x4xf32>
    %31 = vector.shape_cast %30 : vector<8x8x4xf32> to vector<64x4xf32>
    %c4 = arith.constant 4 : index
    %c0_32 = arith.constant 0 : index
    %c0_33 = arith.constant 0 : index
    %32 = vector.load %arg5[%c4, %c0_32, %c0_33] : memref<25x4x128xf32, #tpu.memory_space<vmem>>, vector<1x4x128xf32>
    %33 = vector.shape_cast %32 : vector<1x4x128xf32> to vector<4x128xf32>
    %cst_34 = arith.constant dense<0.000000e+00> : vector<64x128xf32>
    %34 = tpu.matmul %31, %33, %cst_34 {dimension_numbers = #tpu.dot_dimension_numbers<[1], [0], [0], [1], [0, 0, 1, 1], [], []>} : vector<64x4xf32>, vector<4x128xf32>, vector<64x128xf32> -> vector<64x128xf32>
    %35 = arith.addf %28, %34 : vector<64x128xf32>
    %c0_35 = arith.constant 0 : index
    %c0_36 = arith.constant 0 : index
    %c0_37 = arith.constant 0 : index
    %c0_38 = arith.constant 0 : index
    %36 = vector.load %arg3[%c0_35, %c0_36, %c0_37, %c0_38] : memref<1x9x10x4xf32, #tpu.memory_space<vmem>>, vector<1x8x8x4xf32>
    %37 = vector.shape_cast %36 : vector<1x8x8x4xf32> to vector<8x8x4xf32>
    %38 = vector.shape_cast %37 : vector<8x8x4xf32> to vector<64x4xf32>
    %c5 = arith.constant 5 : index
    %c0_39 = arith.constant 0 : index
    %c0_40 = arith.constant 0 : index
    %39 = vector.load %arg5[%c5, %c0_39, %c0_40] : memref<25x4x128xf32, #tpu.memory_space<vmem>>, vector<1x4x128xf32>
    %40 = vector.shape_cast %39 : vector<1x4x128xf32> to vector<4x128xf32>
    %cst_41 = arith.constant dense<0.000000e+00> : vector<64x128xf32>
    %41 = tpu.matmul %38, %40, %cst_41 {dimension_numbers = #tpu.dot_dimension_numbers<[1], [0], [0], [1], [0, 0, 1, 1], [], []>} : vector<64x4xf32>, vector<4x128xf32>, vector<64x128xf32> -> vector<64x128xf32>
    %42 = arith.addf %35, %41 : vector<64x128xf32>
    %c0_42 = arith.constant 0 : index
    %c0_43 = arith.constant 0 : index
    %c0_44 = arith.constant 0 : index
    %c0_45 = arith.constant 0 : index
    %43 = vector.load %arg4[%c0_42, %c0_43, %c0_44, %c0_45] : memref<1x9x9x4xf32, #tpu.memory_space<vmem>>, vector<1x8x8x4xf32>
    %44 = vector.shape_cast %43 : vector<1x8x8x4xf32> to vector<8x8x4xf32>
    %45 = vector.shape_cast %44 : vector<8x8x4xf32> to vector<64x4xf32>
    %c6 = arith.constant 6 : index
    %c0_46 = arith.constant 0 : index
    %c0_47 = arith.constant 0 : index
    %46 = vector.load %arg5[%c6, %c0_46, %c0_47] : memref<25x4x128xf32, #tpu.memory_space<vmem>>, vector<1x4x128xf32>
    %47 = vector.shape_cast %46 : vector<1x4x128xf32> to vector<4x128xf32>
    %cst_48 = arith.constant dense<0.000000e+00> : vector<64x128xf32>
    %48 = tpu.matmul %45, %47, %cst_48 {dimension_numbers = #tpu.dot_dimension_numbers<[1], [0], [0], [1], [0, 0, 1, 1], [], []>} : vector<64x4xf32>, vector<4x128xf32>, vector<64x128xf32> -> vector<64x128xf32>
    %49 = arith.addf %42, %48 : vector<64x128xf32>
    %c0_49 = arith.constant 0 : index
    %c0_50 = arith.constant 0 : index
    %c1_51 = arith.constant 1 : index
    %c0_52 = arith.constant 0 : index
    %50 = vector.load %arg3[%c0_49, %c0_50, %c1_51, %c0_52] : memref<1x9x10x4xf32, #tpu.memory_space<vmem>>, vector<1x8x8x4xf32>
    %51 = vector.shape_cast %50 : vector<1x8x8x4xf32> to vector<8x8x4xf32>
    %52 = vector.shape_cast %51 : vector<8x8x4xf32> to vector<64x4xf32>
    %c7 = arith.constant 7 : index
    %c0_53 = arith.constant 0 : index
    %c0_54 = arith.constant 0 : index
    %53 = vector.load %arg5[%c7, %c0_53, %c0_54] : memref<25x4x128xf32, #tpu.memory_space<vmem>>, vector<1x4x128xf32>
    %54 = vector.shape_cast %53 : vector<1x4x128xf32> to vector<4x128xf32>
    %cst_55 = arith.constant dense<0.000000e+00> : vector<64x128xf32>
    %55 = tpu.matmul %52, %54, %cst_55 {dimension_numbers = #tpu.dot_dimension_numbers<[1], [0], [0], [1], [0, 0, 1, 1], [], []>} : vector<64x4xf32>, vector<4x128xf32>, vector<64x128xf32> -> vector<64x128xf32>
    %56 = arith.addf %49, %55 : vector<64x128xf32>
    %c0_56 = arith.constant 0 : index
    %c0_57 = arith.constant 0 : index
    %c1_58 = arith.constant 1 : index
    %c0_59 = arith.constant 0 : index
    %57 = vector.load %arg4[%c0_56, %c0_57, %c1_58, %c0_59] : memref<1x9x9x4xf32, #tpu.memory_space<vmem>>, vector<1x8x8x4xf32>
    %58 = vector.shape_cast %57 : vector<1x8x8x4xf32> to vector<8x8x4xf32>
    %59 = vector.shape_cast %58 : vector<8x8x4xf32> to vector<64x4xf32>
    %c8 = arith.constant 8 : index
    %c0_60 = arith.constant 0 : index
    %c0_61 = arith.constant 0 : index
    %60 = vector.load %arg5[%c8, %c0_60, %c0_61] : memref<25x4x128xf32, #tpu.memory_space<vmem>>, vector<1x4x128xf32>
    %61 = vector.shape_cast %60 : vector<1x4x128xf32> to vector<4x128xf32>
    %cst_62 = arith.constant dense<0.000000e+00> : vector<64x128xf32>
    %62 = tpu.matmul %59, %61, %cst_62 {dimension_numbers = #tpu.dot_dimension_numbers<[1], [0], [0], [1], [0, 0, 1, 1], [], []>} : vector<64x4xf32>, vector<4x128xf32>, vector<64x128xf32> -> vector<64x128xf32>
    %63 = arith.addf %56, %62 : vector<64x128xf32>
    %c0_63 = arith.constant 0 : index
    %c0_64 = arith.constant 0 : index
    %c2_65 = arith.constant 2 : index
    %c0_66 = arith.constant 0 : index
    %64 = vector.load %arg3[%c0_63, %c0_64, %c2_65, %c0_66] : memref<1x9x10x4xf32, #tpu.memory_space<vmem>>, vector<1x8x8x4xf32>
    %65 = vector.shape_cast %64 : vector<1x8x8x4xf32> to vector<8x8x4xf32>
    %66 = vector.shape_cast %65 : vector<8x8x4xf32> to vector<64x4xf32>
    %c9 = arith.constant 9 : index
    %c0_67 = arith.constant 0 : index
    %c0_68 = arith.constant 0 : index
    %67 = vector.load %arg5[%c9, %c0_67, %c0_68] : memref<25x4x128xf32, #tpu.memory_space<vmem>>, vector<1x4x128xf32>
    %68 = vector.shape_cast %67 : vector<1x4x128xf32> to vector<4x128xf32>
    %cst_69 = arith.constant dense<0.000000e+00> : vector<64x128xf32>
    %69 = tpu.matmul %66, %68, %cst_69 {dimension_numbers = #tpu.dot_dimension_numbers<[1], [0], [0], [1], [0, 0, 1, 1], [], []>} : vector<64x4xf32>, vector<4x128xf32>, vector<64x128xf32> -> vector<64x128xf32>
    %70 = arith.addf %63, %69 : vector<64x128xf32>
    %c0_70 = arith.constant 0 : index
    %c1_71 = arith.constant 1 : index
    %c0_72 = arith.constant 0 : index
    %c0_73 = arith.constant 0 : index
    %71 = vector.load %arg1[%c0_70, %c1_71, %c0_72, %c0_73] : memref<1x10x10x4xf32, #tpu.memory_space<vmem>>, vector<1x8x8x4xf32>
    %72 = vector.shape_cast %71 : vector<1x8x8x4xf32> to vector<8x8x4xf32>
    %73 = vector.shape_cast %72 : vector<8x8x4xf32> to vector<64x4xf32>
    %c10 = arith.constant 10 : index
    %c0_74 = arith.constant 0 : index
    %c0_75 = arith.constant 0 : index
    %74 = vector.load %arg5[%c10, %c0_74, %c0_75] : memref<25x4x128xf32, #tpu.memory_space<vmem>>, vector<1x4x128xf32>
    %75 = vector.shape_cast %74 : vector<1x4x128xf32> to vector<4x128xf32>
    %cst_76 = arith.constant dense<0.000000e+00> : vector<64x128xf32>
    %76 = tpu.matmul %73, %75, %cst_76 {dimension_numbers = #tpu.dot_dimension_numbers<[1], [0], [0], [1], [0, 0, 1, 1], [], []>} : vector<64x4xf32>, vector<4x128xf32>, vector<64x128xf32> -> vector<64x128xf32>
    %77 = arith.addf %70, %76 : vector<64x128xf32>
    %c0_77 = arith.constant 0 : index
    %c1_78 = arith.constant 1 : index
    %c0_79 = arith.constant 0 : index
    %c0_80 = arith.constant 0 : index
    %78 = vector.load %arg2[%c0_77, %c1_78, %c0_79, %c0_80] : memref<1x10x9x4xf32, #tpu.memory_space<vmem>>, vector<1x8x8x4xf32>
    %79 = vector.shape_cast %78 : vector<1x8x8x4xf32> to vector<8x8x4xf32>
    %80 = vector.shape_cast %79 : vector<8x8x4xf32> to vector<64x4xf32>
    %c11 = arith.constant 11 : index
    %c0_81 = arith.constant 0 : index
    %c0_82 = arith.constant 0 : index
    %81 = vector.load %arg5[%c11, %c0_81, %c0_82] : memref<25x4x128xf32, #tpu.memory_space<vmem>>, vector<1x4x128xf32>
    %82 = vector.shape_cast %81 : vector<1x4x128xf32> to vector<4x128xf32>
    %cst_83 = arith.constant dense<0.000000e+00> : vector<64x128xf32>
    %83 = tpu.matmul %80, %82, %cst_83 {dimension_numbers = #tpu.dot_dimension_numbers<[1], [0], [0], [1], [0, 0, 1, 1], [], []>} : vector<64x4xf32>, vector<4x128xf32>, vector<64x128xf32> -> vector<64x128xf32>
    %84 = arith.addf %77, %83 : vector<64x128xf32>
    %c0_84 = arith.constant 0 : index
    %c1_85 = arith.constant 1 : index
    %c1_86 = arith.constant 1 : index
    %c0_87 = arith.constant 0 : index
    %85 = vector.load %arg1[%c0_84, %c1_85, %c1_86, %c0_87] : memref<1x10x10x4xf32, #tpu.memory_space<vmem>>, vector<1x8x8x4xf32>
    %86 = vector.shape_cast %85 : vector<1x8x8x4xf32> to vector<8x8x4xf32>
    %87 = vector.shape_cast %86 : vector<8x8x4xf32> to vector<64x4xf32>
    %c12 = arith.constant 12 : index
    %c0_88 = arith.constant 0 : index
    %c0_89 = arith.constant 0 : index
    %88 = vector.load %arg5[%c12, %c0_88, %c0_89] : memref<25x4x128xf32, #tpu.memory_space<vmem>>, vector<1x4x128xf32>
    %89 = vector.shape_cast %88 : vector<1x4x128xf32> to vector<4x128xf32>
    %cst_90 = arith.constant dense<0.000000e+00> : vector<64x128xf32>
    %90 = tpu.matmul %87, %89, %cst_90 {dimension_numbers = #tpu.dot_dimension_numbers<[1], [0], [0], [1], [0, 0, 1, 1], [], []>} : vector<64x4xf32>, vector<4x128xf32>, vector<64x128xf32> -> vector<64x128xf32>
    %91 = arith.addf %84, %90 : vector<64x128xf32>
    %c0_91 = arith.constant 0 : index
    %c1_92 = arith.constant 1 : index
    %c1_93 = arith.constant 1 : index
    %c0_94 = arith.constant 0 : index
    %92 = vector.load %arg2[%c0_91, %c1_92, %c1_93, %c0_94] : memref<1x10x9x4xf32, #tpu.memory_space<vmem>>, vector<1x8x8x4xf32>
    %93 = vector.shape_cast %92 : vector<1x8x8x4xf32> to vector<8x8x4xf32>
    %94 = vector.shape_cast %93 : vector<8x8x4xf32> to vector<64x4xf32>
    %c13 = arith.constant 13 : index
    %c0_95 = arith.constant 0 : index
    %c0_96 = arith.constant 0 : index
    %95 = vector.load %arg5[%c13, %c0_95, %c0_96] : memref<25x4x128xf32, #tpu.memory_space<vmem>>, vector<1x4x128xf32>
    %96 = vector.shape_cast %95 : vector<1x4x128xf32> to vector<4x128xf32>
    %cst_97 = arith.constant dense<0.000000e+00> : vector<64x128xf32>
    %97 = tpu.matmul %94, %96, %cst_97 {dimension_numbers = #tpu.dot_dimension_numbers<[1], [0], [0], [1], [0, 0, 1, 1], [], []>} : vector<64x4xf32>, vector<4x128xf32>, vector<64x128xf32> -> vector<64x128xf32>
    %98 = arith.addf %91, %97 : vector<64x128xf32>
    %c0_98 = arith.constant 0 : index
    %c1_99 = arith.constant 1 : index
    %c2_100 = arith.constant 2 : index
    %c0_101 = arith.constant 0 : index
    %99 = vector.load %arg1[%c0_98, %c1_99, %c2_100, %c0_101] : memref<1x10x10x4xf32, #tpu.memory_space<vmem>>, vector<1x8x8x4xf32>
    %100 = vector.shape_cast %99 : vector<1x8x8x4xf32> to vector<8x8x4xf32>
    %101 = vector.shape_cast %100 : vector<8x8x4xf32> to vector<64x4xf32>
    %c14 = arith.constant 14 : index
    %c0_102 = arith.constant 0 : index
    %c0_103 = arith.constant 0 : index
    %102 = vector.load %arg5[%c14, %c0_102, %c0_103] : memref<25x4x128xf32, #tpu.memory_space<vmem>>, vector<1x4x128xf32>
    %103 = vector.shape_cast %102 : vector<1x4x128xf32> to vector<4x128xf32>
    %cst_104 = arith.constant dense<0.000000e+00> : vector<64x128xf32>
    %104 = tpu.matmul %101, %103, %cst_104 {dimension_numbers = #tpu.dot_dimension_numbers<[1], [0], [0], [1], [0, 0, 1, 1], [], []>} : vector<64x4xf32>, vector<4x128xf32>, vector<64x128xf32> -> vector<64x128xf32>
    %105 = arith.addf %98, %104 : vector<64x128xf32>
    %c0_105 = arith.constant 0 : index
    %c1_106 = arith.constant 1 : index
    %c0_107 = arith.constant 0 : index
    %c0_108 = arith.constant 0 : index
    %106 = vector.load %arg3[%c0_105, %c1_106, %c0_107, %c0_108] : memref<1x9x10x4xf32, #tpu.memory_space<vmem>>, vector<1x8x8x4xf32>
    %107 = vector.shape_cast %106 : vector<1x8x8x4xf32> to vector<8x8x4xf32>
    %108 = vector.shape_cast %107 : vector<8x8x4xf32> to vector<64x4xf32>
    %c15 = arith.constant 15 : index
    %c0_109 = arith.constant 0 : index
    %c0_110 = arith.constant 0 : index
    %109 = vector.load %arg5[%c15, %c0_109, %c0_110] : memref<25x4x128xf32, #tpu.memory_space<vmem>>, vector<1x4x128xf32>
    %110 = vector.shape_cast %109 : vector<1x4x128xf32> to vector<4x128xf32>
    %cst_111 = arith.constant dense<0.000000e+00> : vector<64x128xf32>
    %111 = tpu.matmul %108, %110, %cst_111 {dimension_numbers = #tpu.dot_dimension_numbers<[1], [0], [0], [1], [0, 0, 1, 1], [], []>} : vector<64x4xf32>, vector<4x128xf32>, vector<64x128xf32> -> vector<64x128xf32>
    %112 = arith.addf %105, %111 : vector<64x128xf32>
    %c0_112 = arith.constant 0 : index
    %c1_113 = arith.constant 1 : index
    %c0_114 = arith.constant 0 : index
    %c0_115 = arith.constant 0 : index
    %113 = vector.load %arg4[%c0_112, %c1_113, %c0_114, %c0_115] : memref<1x9x9x4xf32, #tpu.memory_space<vmem>>, vector<1x8x8x4xf32>
    %114 = vector.shape_cast %113 : vector<1x8x8x4xf32> to vector<8x8x4xf32>
    %115 = vector.shape_cast %114 : vector<8x8x4xf32> to vector<64x4xf32>
    %c16 = arith.constant 16 : index
    %c0_116 = arith.constant 0 : index
    %c0_117 = arith.constant 0 : index
    %116 = vector.load %arg5[%c16, %c0_116, %c0_117] : memref<25x4x128xf32, #tpu.memory_space<vmem>>, vector<1x4x128xf32>
    %117 = vector.shape_cast %116 : vector<1x4x128xf32> to vector<4x128xf32>
    %cst_118 = arith.constant dense<0.000000e+00> : vector<64x128xf32>
    %118 = tpu.matmul %115, %117, %cst_118 {dimension_numbers = #tpu.dot_dimension_numbers<[1], [0], [0], [1], [0, 0, 1, 1], [], []>} : vector<64x4xf32>, vector<4x128xf32>, vector<64x128xf32> -> vector<64x128xf32>
    %119 = arith.addf %112, %118 : vector<64x128xf32>
    %c0_119 = arith.constant 0 : index
    %c1_120 = arith.constant 1 : index
    %c1_121 = arith.constant 1 : index
    %c0_122 = arith.constant 0 : index
    %120 = vector.load %arg3[%c0_119, %c1_120, %c1_121, %c0_122] : memref<1x9x10x4xf32, #tpu.memory_space<vmem>>, vector<1x8x8x4xf32>
    %121 = vector.shape_cast %120 : vector<1x8x8x4xf32> to vector<8x8x4xf32>
    %122 = vector.shape_cast %121 : vector<8x8x4xf32> to vector<64x4xf32>
    %c17 = arith.constant 17 : index
    %c0_123 = arith.constant 0 : index
    %c0_124 = arith.constant 0 : index
    %123 = vector.load %arg5[%c17, %c0_123, %c0_124] : memref<25x4x128xf32, #tpu.memory_space<vmem>>, vector<1x4x128xf32>
    %124 = vector.shape_cast %123 : vector<1x4x128xf32> to vector<4x128xf32>
    %cst_125 = arith.constant dense<0.000000e+00> : vector<64x128xf32>
    %125 = tpu.matmul %122, %124, %cst_125 {dimension_numbers = #tpu.dot_dimension_numbers<[1], [0], [0], [1], [0, 0, 1, 1], [], []>} : vector<64x4xf32>, vector<4x128xf32>, vector<64x128xf32> -> vector<64x128xf32>
    %126 = arith.addf %119, %125 : vector<64x128xf32>
    %c0_126 = arith.constant 0 : index
    %c1_127 = arith.constant 1 : index
    %c1_128 = arith.constant 1 : index
    %c0_129 = arith.constant 0 : index
    %127 = vector.load %arg4[%c0_126, %c1_127, %c1_128, %c0_129] : memref<1x9x9x4xf32, #tpu.memory_space<vmem>>, vector<1x8x8x4xf32>
    %128 = vector.shape_cast %127 : vector<1x8x8x4xf32> to vector<8x8x4xf32>
    %129 = vector.shape_cast %128 : vector<8x8x4xf32> to vector<64x4xf32>
    %c18 = arith.constant 18 : index
    %c0_130 = arith.constant 0 : index
    %c0_131 = arith.constant 0 : index
    %130 = vector.load %arg5[%c18, %c0_130, %c0_131] : memref<25x4x128xf32, #tpu.memory_space<vmem>>, vector<1x4x128xf32>
    %131 = vector.shape_cast %130 : vector<1x4x128xf32> to vector<4x128xf32>
    %cst_132 = arith.constant dense<0.000000e+00> : vector<64x128xf32>
    %132 = tpu.matmul %129, %131, %cst_132 {dimension_numbers = #tpu.dot_dimension_numbers<[1], [0], [0], [1], [0, 0, 1, 1], [], []>} : vector<64x4xf32>, vector<4x128xf32>, vector<64x128xf32> -> vector<64x128xf32>
    %133 = arith.addf %126, %132 : vector<64x128xf32>
    %c0_133 = arith.constant 0 : index
    %c1_134 = arith.constant 1 : index
    %c2_135 = arith.constant 2 : index
    %c0_136 = arith.constant 0 : index
    %134 = vector.load %arg3[%c0_133, %c1_134, %c2_135, %c0_136] : memref<1x9x10x4xf32, #tpu.memory_space<vmem>>, vector<1x8x8x4xf32>
    %135 = vector.shape_cast %134 : vector<1x8x8x4xf32> to vector<8x8x4xf32>
    %136 = vector.shape_cast %135 : vector<8x8x4xf32> to vector<64x4xf32>
    %c19 = arith.constant 19 : index
    %c0_137 = arith.constant 0 : index
    %c0_138 = arith.constant 0 : index
    %137 = vector.load %arg5[%c19, %c0_137, %c0_138] : memref<25x4x128xf32, #tpu.memory_space<vmem>>, vector<1x4x128xf32>
    %138 = vector.shape_cast %137 : vector<1x4x128xf32> to vector<4x128xf32>
    %cst_139 = arith.constant dense<0.000000e+00> : vector<64x128xf32>
    %139 = tpu.matmul %136, %138, %cst_139 {dimension_numbers = #tpu.dot_dimension_numbers<[1], [0], [0], [1], [0, 0, 1, 1], [], []>} : vector<64x4xf32>, vector<4x128xf32>, vector<64x128xf32> -> vector<64x128xf32>
    %140 = arith.addf %133, %139 : vector<64x128xf32>
    %c0_140 = arith.constant 0 : index
    %c2_141 = arith.constant 2 : index
    %c0_142 = arith.constant 0 : index
    %c0_143 = arith.constant 0 : index
    %141 = vector.load %arg1[%c0_140, %c2_141, %c0_142, %c0_143] : memref<1x10x10x4xf32, #tpu.memory_space<vmem>>, vector<1x8x8x4xf32>
    %142 = vector.shape_cast %141 : vector<1x8x8x4xf32> to vector<8x8x4xf32>
    %143 = vector.shape_cast %142 : vector<8x8x4xf32> to vector<64x4xf32>
    %c20 = arith.constant 20 : index
    %c0_144 = arith.constant 0 : index
    %c0_145 = arith.constant 0 : index
    %144 = vector.load %arg5[%c20, %c0_144, %c0_145] : memref<25x4x128xf32, #tpu.memory_space<vmem>>, vector<1x4x128xf32>
    %145 = vector.shape_cast %144 : vector<1x4x128xf32> to vector<4x128xf32>
    %cst_146 = arith.constant dense<0.000000e+00> : vector<64x128xf32>
    %146 = tpu.matmul %143, %145, %cst_146 {dimension_numbers = #tpu.dot_dimension_numbers<[1], [0], [0], [1], [0, 0, 1, 1], [], []>} : vector<64x4xf32>, vector<4x128xf32>, vector<64x128xf32> -> vector<64x128xf32>
    %147 = arith.addf %140, %146 : vector<64x128xf32>
    %c0_147 = arith.constant 0 : index
    %c2_148 = arith.constant 2 : index
    %c0_149 = arith.constant 0 : index
    %c0_150 = arith.constant 0 : index
    %148 = vector.load %arg2[%c0_147, %c2_148, %c0_149, %c0_150] : memref<1x10x9x4xf32, #tpu.memory_space<vmem>>, vector<1x8x8x4xf32>
    %149 = vector.shape_cast %148 : vector<1x8x8x4xf32> to vector<8x8x4xf32>
    %150 = vector.shape_cast %149 : vector<8x8x4xf32> to vector<64x4xf32>
    %c21 = arith.constant 21 : index
    %c0_151 = arith.constant 0 : index
    %c0_152 = arith.constant 0 : index
    %151 = vector.load %arg5[%c21, %c0_151, %c0_152] : memref<25x4x128xf32, #tpu.memory_space<vmem>>, vector<1x4x128xf32>
    %152 = vector.shape_cast %151 : vector<1x4x128xf32> to vector<4x128xf32>
    %cst_153 = arith.constant dense<0.000000e+00> : vector<64x128xf32>
    %153 = tpu.matmul %150, %152, %cst_153 {dimension_numbers = #tpu.dot_dimension_numbers<[1], [0], [0], [1], [0, 0, 1, 1], [], []>} : vector<64x4xf32>, vector<4x128xf32>, vector<64x128xf32> -> vector<64x128xf32>
    %154 = arith.addf %147, %153 : vector<64x128xf32>
    %c0_154 = arith.constant 0 : index
    %c2_155 = arith.constant 2 : index
    %c1_156 = arith.constant 1 : index
    %c0_157 = arith.constant 0 : index
    %155 = vector.load %arg1[%c0_154, %c2_155, %c1_156, %c0_157] : memref<1x10x10x4xf32, #tpu.memory_space<vmem>>, vector<1x8x8x4xf32>
    %156 = vector.shape_cast %155 : vector<1x8x8x4xf32> to vector<8x8x4xf32>
    %157 = vector.shape_cast %156 : vector<8x8x4xf32> to vector<64x4xf32>
    %c22 = arith.constant 22 : index
    %c0_158 = arith.constant 0 : index
    %c0_159 = arith.constant 0 : index
    %158 = vector.load %arg5[%c22, %c0_158, %c0_159] : memref<25x4x128xf32, #tpu.memory_space<vmem>>, vector<1x4x128xf32>
    %159 = vector.shape_cast %158 : vector<1x4x128xf32> to vector<4x128xf32>
    %cst_160 = arith.constant dense<0.000000e+00> : vector<64x128xf32>
    %160 = tpu.matmul %157, %159, %cst_160 {dimension_numbers = #tpu.dot_dimension_numbers<[1], [0], [0], [1], [0, 0, 1, 1], [], []>} : vector<64x4xf32>, vector<4x128xf32>, vector<64x128xf32> -> vector<64x128xf32>
    %161 = arith.addf %154, %160 : vector<64x128xf32>
    %c0_161 = arith.constant 0 : index
    %c2_162 = arith.constant 2 : index
    %c1_163 = arith.constant 1 : index
    %c0_164 = arith.constant 0 : index
    %162 = vector.load %arg2[%c0_161, %c2_162, %c1_163, %c0_164] : memref<1x10x9x4xf32, #tpu.memory_space<vmem>>, vector<1x8x8x4xf32>
    %163 = vector.shape_cast %162 : vector<1x8x8x4xf32> to vector<8x8x4xf32>
    %164 = vector.shape_cast %163 : vector<8x8x4xf32> to vector<64x4xf32>
    %c23 = arith.constant 23 : index
    %c0_165 = arith.constant 0 : index
    %c0_166 = arith.constant 0 : index
    %165 = vector.load %arg5[%c23, %c0_165, %c0_166] : memref<25x4x128xf32, #tpu.memory_space<vmem>>, vector<1x4x128xf32>
    %166 = vector.shape_cast %165 : vector<1x4x128xf32> to vector<4x128xf32>
    %cst_167 = arith.constant dense<0.000000e+00> : vector<64x128xf32>
    %167 = tpu.matmul %164, %166, %cst_167 {dimension_numbers = #tpu.dot_dimension_numbers<[1], [0], [0], [1], [0, 0, 1, 1], [], []>} : vector<64x4xf32>, vector<4x128xf32>, vector<64x128xf32> -> vector<64x128xf32>
    %168 = arith.addf %161, %167 : vector<64x128xf32>
    %c0_168 = arith.constant 0 : index
    %c2_169 = arith.constant 2 : index
    %c2_170 = arith.constant 2 : index
    %c0_171 = arith.constant 0 : index
    %169 = vector.load %arg1[%c0_168, %c2_169, %c2_170, %c0_171] : memref<1x10x10x4xf32, #tpu.memory_space<vmem>>, vector<1x8x8x4xf32>
    %170 = vector.shape_cast %169 : vector<1x8x8x4xf32> to vector<8x8x4xf32>
    %171 = vector.shape_cast %170 : vector<8x8x4xf32> to vector<64x4xf32>
    %c24 = arith.constant 24 : index
    %c0_172 = arith.constant 0 : index
    %c0_173 = arith.constant 0 : index
    %172 = vector.load %arg5[%c24, %c0_172, %c0_173] : memref<25x4x128xf32, #tpu.memory_space<vmem>>, vector<1x4x128xf32>
    %173 = vector.shape_cast %172 : vector<1x4x128xf32> to vector<4x128xf32>
    %cst_174 = arith.constant dense<0.000000e+00> : vector<64x128xf32>
    %174 = tpu.matmul %171, %173, %cst_174 {dimension_numbers = #tpu.dot_dimension_numbers<[1], [0], [0], [1], [0, 0, 1, 1], [], []>} : vector<64x4xf32>, vector<4x128xf32>, vector<64x128xf32> -> vector<64x128xf32>
    %175 = arith.addf %168, %174 : vector<64x128xf32>
    %176 = arith.truncf %175 : vector<64x128xf32> to vector<64x128xbf16>
    %c0_175 = arith.constant 0 : index
    %c0_176 = arith.constant 0 : index
    %c0_177 = arith.constant 0 : index
    %177 = vector.load %arg6[%c0_175, %c0_176, %c0_177] : memref<1x64x128xbf16, #tpu.memory_space<vmem>>, vector<1x64x128xbf16>
    %178 = vector.shape_cast %177 : vector<1x64x128xbf16> to vector<64x128xbf16>
    %179 = vector.shape_cast %176 : vector<64x128xbf16> to vector<1x64x128xbf16>
    tpu.vector_store %arg6[%c0_175, %c0_176, %c0_177], %179 {strides = array<i32>} : memref<1x64x128xbf16, #tpu.memory_space<vmem>>, vector<1x64x128xbf16>,
    %cst_178 = arith.constant dense<0.000000e+00> : vector<128xf32>
    %180 = vector.multi_reduction <add>, %175, %cst_178 [0] : vector<64x128xf32> to vector<128xf32>
    %181 = vector.shape_cast %180 : vector<128xf32> to vector<1x128xf32>
    %182 = vector.shape_cast %181 : vector<1x128xf32> to vector<1x128xf32>
    %183 = vector.broadcast %182 : vector<1x128xf32> to vector<8x128xf32>
    %c0_179 = arith.constant 0 : index
    %c0_180 = arith.constant 0 : index
    %c0_181 = arith.constant 0 : index
    %184 = vector.load %arg7[%c0_179, %c0_180, %c0_181] : memref<1x8x128xf32, #tpu.memory_space<vmem>>, vector<1x8x128xf32>
    %185 = vector.shape_cast %184 : vector<1x8x128xf32> to vector<8x128xf32>
    %186 = vector.shape_cast %183 : vector<8x128xf32> to vector<1x8x128xf32>
    tpu.vector_store %arg7[%c0_179, %c0_180, %c0_181], %186 {strides = array<i32>} : memref<1x8x128xf32, #tpu.memory_space<vmem>>, vector<1x8x128xf32>,
    %187 = arith.mulf %175, %175 : vector<64x128xf32>
    %cst_182 = arith.constant dense<0.000000e+00> : vector<128xf32>
    %188 = vector.multi_reduction <add>, %187, %cst_182 [0] : vector<64x128xf32> to vector<128xf32>
    %189 = vector.shape_cast %188 : vector<128xf32> to vector<1x128xf32>
    %190 = vector.shape_cast %189 : vector<1x128xf32> to vector<1x128xf32>
    %191 = vector.broadcast %190 : vector<1x128xf32> to vector<8x128xf32>
    %c0_183 = arith.constant 0 : index
    %c0_184 = arith.constant 0 : index
    %c0_185 = arith.constant 0 : index
    %192 = vector.load %arg8[%c0_183, %c0_184, %c0_185] : memref<1x8x128xf32, #tpu.memory_space<vmem>>, vector<1x8x128xf32>
    %193 = vector.shape_cast %192 : vector<1x8x128xf32> to vector<8x128xf32>
    %194 = vector.shape_cast %191 : vector<8x128xf32> to vector<1x8x128xf32>
    tpu.vector_store %arg8[%c0_183, %c0_184, %c0_185], %194 {strides = array<i32>} : memref<1x8x128xf32, #tpu.memory_space<vmem>>, vector<1x8x128xf32>,
    return
  }
  func.func @transform_0(%arg0: i32) -> (i32, i32, i32, i32) {
    %c0_i32 = arith.constant 0 : i32
    %c0_i32_0 = arith.constant 0 : i32
    %c0_i32_1 = arith.constant 0 : i32
    %c0_i32_2 = arith.constant 0 : i32
    return %arg0, %c0_i32, %c0_i32_0, %c0_i32_1 : i32, i32, i32, i32
  }
  func.func @transform_1(%arg0: i32) -> (i32, i32, i32, i32) {
    %c0_i32 = arith.constant 0 : i32
    %c0_i32_0 = arith.constant 0 : i32
    %c0_i32_1 = arith.constant 0 : i32
    %c0_i32_2 = arith.constant 0 : i32
    return %arg0, %c0_i32, %c0_i32_0, %c0_i32_1 : i32, i32, i32, i32
  }
  func.func @transform_2(%arg0: i32) -> (i32, i32, i32, i32) {
    %c0_i32 = arith.constant 0 : i32
    %c0_i32_0 = arith.constant 0 : i32
    %c0_i32_1 = arith.constant 0 : i32
    %c0_i32_2 = arith.constant 0 : i32
    return %arg0, %c0_i32, %c0_i32_0, %c0_i32_1 : i32, i32, i32, i32
  }
  func.func @transform_3(%arg0: i32) -> (i32, i32, i32, i32) {
    %c0_i32 = arith.constant 0 : i32
    %c0_i32_0 = arith.constant 0 : i32
    %c0_i32_1 = arith.constant 0 : i32
    %c0_i32_2 = arith.constant 0 : i32
    return %arg0, %c0_i32, %c0_i32_0, %c0_i32_1 : i32, i32, i32, i32
  }
  func.func @transform_4(%arg0: i32) -> (i32, i32, i32) {
    %c0_i32 = arith.constant 0 : i32
    %c0_i32_0 = arith.constant 0 : i32
    %c0_i32_1 = arith.constant 0 : i32
    %c0_i32_2 = arith.constant 0 : i32
    return %c0_i32, %c0_i32_0, %c0_i32_1 : i32, i32, i32
  }
  func.func @transform_5(%arg0: i32) -> (i32, i32, i32) {
    %c0_i32 = arith.constant 0 : i32
    %c0_i32_0 = arith.constant 0 : i32
    %c0_i32_1 = arith.constant 0 : i32
    return %arg0, %c0_i32, %c0_i32_0 : i32, i32, i32
  }
  func.func @transform_6(%arg0: i32) -> (i32, i32, i32) {
    %c0_i32 = arith.constant 0 : i32
    %c0_i32_0 = arith.constant 0 : i32
    %c0_i32_1 = arith.constant 0 : i32
    return %arg0, %c0_i32, %c0_i32_0 : i32, i32, i32
  }
  func.func @transform_7(%arg0: i32) -> (i32, i32, i32) {
    %c0_i32 = arith.constant 0 : i32
    %c0_i32_0 = arith.constant 0 : i32
    %c0_i32_1 = arith.constant 0 : i32
    return %arg0, %c0_i32, %c0_i32_0 : i32, i32, i32
  }
}

module attributes {stable_mosaic.version = 11 : i64} {
  func.func @bn_lrelu_kernel(%arg0: i32, %arg1: memref<128x128xbf16, #tpu.memory_space<vmem>>, %arg2: memref<1x128xf32, #tpu.memory_space<vmem>>, %arg3: memref<1x128xf32, #tpu.memory_space<vmem>>, %arg4: memref<128x128xf32, #tpu.memory_space<vmem>>) attributes {dimension_semantics = [#tpu.dimension_semantics<parallel>], iteration_bounds = array<i64: 1>, scalar_prefetch = 0 : i64, scratch_operands = 0 : i64, tpu.core_type = #tpu.core_type<tc>, window_params = [{transform_indices = @transform_0, window_bounds = array<i64: 128, 128>}, {pipeline_mode = #tpu.pipeline_mode<synchronous>, transform_indices = @transform_1, window_bounds = array<i64: 1, 128>}, {pipeline_mode = #tpu.pipeline_mode<synchronous>, transform_indices = @transform_2, window_bounds = array<i64: 1, 128>}, {transform_indices = @transform_3, window_bounds = array<i64: 128, 128>}]} {
    %c0 = arith.constant 0 : index
    %c0_0 = arith.constant 0 : index
    %0 = vector.load %arg1[%c0, %c0_0] : memref<128x128xbf16, #tpu.memory_space<vmem>>, vector<128x128xbf16>
    %1 = arith.extf %0 : vector<128x128xbf16> to vector<128x128xf32>
    %c0_1 = arith.constant 0 : index
    %c0_2 = arith.constant 0 : index
    %2 = vector.load %arg2[%c0_1, %c0_2] : memref<1x128xf32, #tpu.memory_space<vmem>>, vector<1x128xf32>
    %3 = vector.broadcast %2 : vector<1x128xf32> to vector<128x128xf32>
    %4 = arith.mulf %1, %3 : vector<128x128xf32>
    %c0_3 = arith.constant 0 : index
    %c0_4 = arith.constant 0 : index
    %5 = vector.load %arg3[%c0_3, %c0_4] : memref<1x128xf32, #tpu.memory_space<vmem>>, vector<1x128xf32>
    %6 = vector.broadcast %5 : vector<1x128xf32> to vector<128x128xf32>
    %7 = arith.addf %4, %6 : vector<128x128xf32>
    %cst = arith.constant 0.000000e+00 : f32
    %8 = vector.broadcast %cst : f32 to vector<128x128xf32>
    %9 = arith.cmpf oge, %7, %8 : vector<128x128xf32>
    %cst_5 = arith.constant 2.000000e-02 : f32
    %10 = vector.broadcast %cst_5 : f32 to vector<128x128xf32>
    %11 = arith.mulf %10, %7 : vector<128x128xf32>
    %12 = arith.select %9, %7, %11 : vector<128x128xi1>, vector<128x128xf32>
    %c0_6 = arith.constant 0 : index
    %c0_7 = arith.constant 0 : index
    %13 = vector.load %arg4[%c0_6, %c0_7] : memref<128x128xf32, #tpu.memory_space<vmem>>, vector<128x128xf32>
    tpu.vector_store %arg4[%c0_6, %c0_7], %12 {strides = array<i32>} : memref<128x128xf32, #tpu.memory_space<vmem>>, vector<128x128xf32>,
    return
  }
  func.func @transform_0(%arg0: i32) -> (i32, i32) {
    %c0_i32 = arith.constant 0 : i32
    %c0_i32_0 = arith.constant 0 : i32
    return %arg0, %c0_i32 : i32, i32
  }
  func.func @transform_1(%arg0: i32) -> (i32, i32) {
    %c0_i32 = arith.constant 0 : i32
    %c0_i32_0 = arith.constant 0 : i32
    %c0_i32_1 = arith.constant 0 : i32
    return %c0_i32, %c0_i32_0 : i32, i32
  }
  func.func @transform_2(%arg0: i32) -> (i32, i32) {
    %c0_i32 = arith.constant 0 : i32
    %c0_i32_0 = arith.constant 0 : i32
    %c0_i32_1 = arith.constant 0 : i32
    return %c0_i32, %c0_i32_0 : i32, i32
  }
  func.func @transform_3(%arg0: i32) -> (i32, i32) {
    %c0_i32 = arith.constant 0 : i32
    %c0_i32_0 = arith.constant 0 : i32
    return %arg0, %c0_i32 : i32, i32
  }
}

</mosaic_0001>

<llo_original>
// kernel: encoder_layer.3
$region0: #{encoder_layer.3}
  #allocation0 [shape = 'u32[]', space=smem, size = 0x4, offset = 0x4, fixed_abs, tag = 'smem constant byte address 0x4 - core index']
  #allocation1 [shape = 'u32[72,128]{1,0:T(1,128)}', space=vmem, size = 0x9000, scoped, tag = 'internal scratch']
  %s0 = inlined_call_operand.vmem [shape: bf16[128,128], index: 0, kind: input, shape index: {}]
  %s1 = inlined_call_operand.vmem [shape: f32[1,128], index: 1, kind: input, shape index: {}]
  %s2 = inlined_call_operand.vmem [shape: f32[1,128], index: 2, kind: input, shape index: {}]
  %s3 = inlined_call_operand.vmem [shape: f32[128,128], index: 3, kind: output, shape index: {}]
  %s4 = sld [smem:[#allocation0]]
  $region22: #{encoder_layer.3} parent=0
    _
  %s6 = ssub.s32 1, %s4
  %s7 = scalar_select 0, %s6, %s4
  // Predicated region
  $region2: #{encoder_layer.3} parent=0 // pred_check
    _
  $region3: #{encoder_layer.3} parent=0 // pred_check_branch
    %9 = sbr.rel (0) target = $region5
  $region4: #{encoder_layer.3} parent=0 // pred_region
    _
  $region5: #{encoder_layer.3} parent=0 // pred_fallthru
    _
  // Predicated region
  $region6: #{encoder_layer.3} parent=0 // pred_check
    _
  $region7: #{encoder_layer.3} parent=0 // pred_check_branch
    %11 = sbr.rel (0) target = $region9
  $region8: #{encoder_layer.3} parent=0 // pred_region
    _
  $region9: #{encoder_layer.3} parent=0 // pred_fallthru
    _
  // Predicated region
  $region10: #{encoder_layer.3} parent=0 // pred_check
    _
  $region11: #{encoder_layer.3} parent=0 // pred_check_branch
    %13 = sbr.rel (0) target = $region13
  $region12: #{encoder_layer.3} parent=0 // pred_region
    _
  $region13: #{encoder_layer.3} parent=0 // pred_fallthru
    _
  %v14 = vld [vmem:[%s0] sm:$0xf]
  %v15 = vld [vmem:[%s0 + $0x4] sm:$0xf]
  %v16 = vld [vmem:[%s0 + $0x8] sm:$0xf]
  %v17 = vld [vmem:[%s0 + $0xc] sm:$0xf]
  %v18 = vld [vmem:[%s0 + $0x10] sm:$0xf]
  %v19 = vld [vmem:[%s0 + $0x14] sm:$0xf]
  %v20 = vld [vmem:[%s0 + $0x18] sm:$0xf]
  %v21 = vld [vmem:[%s0 + $0x1c] sm:$0xf]
  %v22 = vld [vmem:[%s0 + $0x20] sm:$0xf]
  %v23 = vld [vmem:[%s0 + $0x24] sm:$0xf]
  %v24 = vld [vmem:[%s0 + $0x28] sm:$0xf]
  %v25 = vld [vmem:[%s0 + $0x2c] sm:$0xf]
  %v26 = vld [vmem:[%s0 + $0x30] sm:$0xf]
  %v27 = vld [vmem:[%s0 + $0x34] sm:$0xf]
  %v28 = vld [vmem:[%s0 + $0x38] sm:$0xf]
  %v29 = vld [vmem:[%s0 + $0x3c] sm:$0xf]
  %v30 = vunpack.c.l.bf16 %v14
  %v31 = vunpack.c.l.bf16 %v15
  %v32 = vunpack.c.l.bf16 %v16
  %v33 = vunpack.c.l.bf16 %v17
  %v34 = vunpack.c.l.bf16 %v18
  %v35 = vunpack.c.l.bf16 %v19
  %v36 = vunpack.c.l.bf16 %v20
  %v37 = vunpack.c.l.bf16 %v21
  %v38 = vunpack.c.l.bf16 %v22
  %v39 = vunpack.c.l.bf16 %v23
  %v40 = vunpack.c.l.bf16 %v24
  %v41 = vunpack.c.l.bf16 %v25
  %v42 = vunpack.c.l.bf16 %v26
  %v43 = vunpack.c.l.bf16 %v27
  %v44 = vunpack.c.l.bf16 %v28
  %v45 = vunpack.c.l.bf16 %v29
  %v46 = vld [vmem:[%s1] sm:$0x1]
  %v48 = vperm.slane %v46, 0
  %v50 = vmul.f32 %v30, %v48
  %v51 = vmul.f32 %v31, %v48
  %v52 = vmul.f32 %v32, %v48
  %v53 = vmul.f32 %v33, %v48
  %v54 = vmul.f32 %v34, %v48
  %v55 = vmul.f32 %v35, %v48
  %v56 = vmul.f32 %v36, %v48
  %v57 = vmul.f32 %v37, %v48
  %v58 = vmul.f32 %v38, %v48
  %v59 = vmul.f32 %v39, %v48
  %v60 = vmul.f32 %v40, %v48
  %v61 = vmul.f32 %v41, %v48
  %v62 = vmul.f32 %v42, %v48
  %v63 = vmul.f32 %v43, %v48
  %v64 = vmul.f32 %v44, %v48
  %v65 = vmul.f32 %v45, %v48
  %v66 = vld [vmem:[%s2] sm:$0x1]
  %v68 = vperm.slane %v66, 0
  %v70 = vadd.f32 %v50, %v68
  %v71 = vadd.f32 %v51, %v68
  %v72 = vadd.f32 %v52, %v68
  %v73 = vadd.f32 %v53, %v68
  %v74 = vadd.f32 %v54, %v68
  %v75 = vadd.f32 %v55, %v68
  %v76 = vadd.f32 %v56, %v68
  %v77 = vadd.f32 %v57, %v68
  %v78 = vadd.f32 %v58, %v68
  %v79 = vadd.f32 %v59, %v68
  %v80 = vadd.f32 %v60, %v68
  %v81 = vadd.f32 %v61, %v68
  %v82 = vadd.f32 %v62, %v68
  %v83 = vadd.f32 %v63, %v68
  %v84 = vadd.f32 %v64, %v68
  %v85 = vadd.f32 %v65, %v68
  %vm86 = vcmp.ge.f32.partialorder %v70, 0.0
  %vm87 = vcmp.ge.f32.partialorder %v71, 0.0
  %vm88 = vcmp.ge.f32.partialorder %v72, 0.0
  %vm89 = vcmp.ge.f32.partialorder %v73, 0.0
  %vm90 = vcmp.ge.f32.partialorder %v74, 0.0
  %vm91 = vcmp.ge.f32.partialorder %v75, 0.0
  %vm92 = vcmp.ge.f32.partialorder %v76, 0.0
  %vm93 = vcmp.ge.f32.partialorder %v77, 0.0
  %vm94 = vcmp.ge.f32.partialorder %v78, 0.0
  %vm95 = vcmp.ge.f32.partialorder %v79, 0.0
  %vm96 = vcmp.ge.f32.partialorder %v80, 0.0
  %vm97 = vcmp.ge.f32.partialorder %v81, 0.0
  %vm98 = vcmp.ge.f32.partialorder %v82, 0.0
  %vm99 = vcmp.ge.f32.partialorder %v83, 0.0
  %vm100 = vcmp.ge.f32.partialorder %v84, 0.0
  %vm101 = vcmp.ge.f32.partialorder %v85, 0.0
  %v102 = vmul.f32 %v70, 0.02
  %v103 = vmul.f32 %v71, 0.02
  %v104 = vmul.f32 %v72, 0.02
  %v105 = vmul.f32 %v73, 0.02
  %v106 = vmul.f32 %v74, 0.02
  %v107 = vmul.f32 %v75, 0.02
  %v108 = vmul.f32 %v76, 0.02
  %v109 = vmul.f32 %v77, 0.02
  %v110 = vmul.f32 %v78, 0.02
  %v111 = vmul.f32 %v79, 0.02
  %v112 = vmul.f32 %v80, 0.02
  %v113 = vmul.f32 %v81, 0.02
  %v114 = vmul.f32 %v82, 0.02
  %v115 = vmul.f32 %v83, 0.02
  %v116 = vmul.f32 %v84, 0.02
  %v117 = vmul.f32 %v85, 0.02
  %v118 = vsel %vm86, %v70, %v102
  %v119 = vsel %vm87, %v71, %v103
  %v120 = vsel %vm88, %v72, %v104
  %v121 = vsel %vm89, %v73, %v105
  %v122 = vsel %vm90, %v74, %v106
  %v123 = vsel %vm91, %v75, %v107
  %v124 = vsel %vm92, %v76, %v108
  %v125 = vsel %vm93, %v77, %v109
  %v126 = vsel %vm94, %v78, %v110
  %v127 = vsel %vm95, %v79, %v111
  %v128 = vsel %vm96, %v80, %v112
  %v129 = vsel %vm97, %v81, %v113
  %v130 = vsel %vm98, %v82, %v114
  %v131 = vsel %vm99, %v83, %v115
  %v132 = vsel %vm100, %v84, %v116
  %v133 = vsel %vm101, %v85, %v117
  %134 = vst [vmem:[%s3] sm:$0xff] %v118
  %135 = vst [vmem:[%s3 + $0x8] sm:$0xff] %v119
  %136 = vst [vmem:[%s3 + $0x10] sm:$0xff] %v120
  %137 = vst [vmem:[%s3 + $0x18] sm:$0xff] %v121
  %138 = vst [vmem:[%s3 + $0x20] sm:$0xff] %v122
  %139 = vst [vmem:[%s3 + $0x28] sm:$0xff] %v123
  %140 = vst [vmem:[%s3 + $0x30] sm:$0xff] %v124
  %141 = vst [vmem:[%s3 + $0x38] sm:$0xff] %v125
  %142 = vst [vmem:[%s3 + $0x40] sm:$0xff] %v126
  %143 = vst [vmem:[%s3 + $0x48] sm:$0xff] %v127
  %144 = vst [vmem:[%s3 + $0x50] sm:$0xff] %v128
  %145 = vst [vmem:[%s3 + $0x58] sm:$0xff] %v129
  %146 = vst [vmem:[%s3 + $0x60] sm:$0xff] %v130
  %147 = vst [vmem:[%s3 + $0x68] sm:$0xff] %v131
  %148 = vst [vmem:[%s3 + $0x70] sm:$0xff] %v132
  %149 = vst [vmem:[%s3 + $0x78] sm:$0xff] %v133
  // Predicated region
  $region14: #{encoder_layer.3} parent=0 // pred_check
    _
  $region15: #{encoder_layer.3} parent=0 // pred_check_branch
    %151 = sbr.rel (0) target = $region17
  $region16: #{encoder_layer.3} parent=0 // pred_region
    _
  $region17: #{encoder_layer.3} parent=0 // pred_fallthru
    _
  // Predicated region
  $region18: #{encoder_layer.3} parent=0 // pred_check
    _
  $region19: #{encoder_layer.3} parent=0 // pred_check_branch
    %153 = sbr.rel (0) target = $region21
  $region20: #{encoder_layer.3} parent=0 // pred_region
    _
  $region21: #{encoder_layer.3} parent=0 // pred_fallthru
    _

// kernel: encoder_layer.2
$region0: #{encoder_layer.2}
  #allocation0 [shape = 'u32[]', space=smem, size = 0x4, offset = 0x4, fixed_abs, tag = 'smem constant byte address 0x4 - core index']
  #allocation1 [shape = 'u32[72,128]{1,0:T(1,128)}', space=vmem, size = 0x9000, scoped, tag = 'internal scratch']
  %s0 = inlined_call_operand.vmem [shape: f32[2,10,10,4], index: 0, kind: input, shape index: {}]
  %s1 = inlined_call_operand.vmem [shape: f32[2,10,9,4], index: 1, kind: input, shape index: {}]
  %s2 = inlined_call_operand.vmem [shape: f32[2,9,10,4], index: 2, kind: input, shape index: {}]
  %s3 = inlined_call_operand.vmem [shape: f32[2,9,9,4], index: 3, kind: input, shape index: {}]
  %s4 = inlined_call_operand.vmem [shape: f32[25,4,128], index: 4, kind: input, shape index: {}]
  %s5 = inlined_call_operand.vmem [shape: bf16[2,64,128], index: 5, kind: output, shape index: {0}]
  %s6 = inlined_call_operand.vmem [shape: f32[2,8,128], index: 6, kind: output, shape index: {1}]
  %s7 = inlined_call_operand.vmem [shape: f32[2,8,128], index: 7, kind: output, shape index: {2}]
  %8 = xla_tuple %s5, %s6, %s7
  %s9 = sld [smem:[#allocation0]]
  $region69: #{encoder_layer.2} parent=0
    _
  %s11 = ssub.s32 1, %s9
  %s12 = scalar_select 0, %s11, %s9
  loop: start=0, step=1, limit=4
  $region2: #{encoder_layer.2} parent=0 // loop_pre_header
    _
  $region3: #{encoder_layer.2} parent=0 // loop_header
    %s14 = sphi 0, %s18
    %p15 = scmp.ge.s32.totalorder %s14, 4
    %s24 = sphi 0, %s26
    %s27 = sphi 0, %s24
    %s28 = sphi 0, %s27
    %s44 = sphi 0, %s28
    %s50 = sphi 0, %s52
    %s53 = sphi 0, %s50
    %s54 = sphi 0, %s53
    %s70 = sphi 0, %s54
    %s76 = sphi 0, %s78
    %s79 = sphi 0, %s76
    %s80 = sphi 0, %s79
    %s96 = sphi 0, %s80
    %s102 = sphi 0, %s104
    %s105 = sphi 0, %s102
    %s106 = sphi 0, %s105
    %s122 = sphi 0, %s106
    %s126 = sphi 0, %s126
    %s128 = sphi 0, %s126
    %s129 = sphi 0, %s128
    %s143 = sphi 0, %s129
    %s149 = sphi 0, %s151
    %s152 = sphi 0, %s149
    %s153 = sphi 0, %s152
    %s169 = sphi 0, %s153
    %s175 = sphi 0, %s177
    %s178 = sphi 0, %s175
    %s179 = sphi 0, %s178
    %s195 = sphi 0, %s179
    %s201 = sphi 0, %s203
    %s204 = sphi 0, %s201
    %s205 = sphi 0, %s204
    %s221 = sphi 0, %s205
  $region4: #{encoder_layer.2} parent=0 // loop_header_branch
    %17 = sbr.rel (%p15) target = $region8
  $region5: #{encoder_layer.2} parent=0 // loop_body
    %s19 = ssub.s32 %s14, 1
    %s20 = ssub.s32 %s14, 2
    %s21 = sadd.s32 %s14, 1
    %s22 = ssub.s32 %s14, %s21
    %p23 = scmp.eq.s32.totalorder %s22, 0
    %s25 = sadd.s32 %s24, 1
    %s26 = scalar_select %p23, %s24, %s25
    %p29 = pneg %p23
    %p30 = scmp.eq.s32.totalorder %s14, 1
    %p31 = por %p29, %p30
    %p32 = scmp.ne.s32.totalorder %s24, %s27
    %p33 = scmp.eq.s32.totalorder %s14, 0
    %p34 = por %p32, %p33
    %p35 = scmp.ne.s32.totalorder %s24, %s27
    %p36 = scmp.eq.s32.totalorder %s19, 1
    %p37 = por %p35, %p36
    %p38 = scmp.ne.s32.totalorder %s27, %s28
    %p39 = scmp.eq.s32.totalorder %s19, 0
    %p40 = por %p38, %p39
    %p41 = scmp.ne.s32.totalorder %s27, %s28
    %p42 = scmp.eq.s32.totalorder %s20, 1
    %p43 = por %p41, %p42
    %p45 = scmp.ne.s32.totalorder %s28, %s44
    %p46 = scmp.eq.s32.totalorder %s20, 0
    %p47 = por %p45, %p46
    %s48 = ssub.s32 %s14, %s21
    %p49 = scmp.eq.s32.totalorder %s48, 0
    %s51 = sadd.s32 %s50, 1
    %s52 = scalar_select %p49, %s50, %s51
    %p55 = pneg %p49
    %p56 = scmp.eq.s32.totalorder %s14, 1
    %p57 = por %p55, %p56
    %p58 = scmp.ne.s32.totalorder %s50, %s53
    %p59 = scmp.eq.s32.totalorder %s14, 0
    %p60 = por %p58, %p59
    %p61 = scmp.ne.s32.totalorder %s50, %s53
    %p62 = scmp.eq.s32.totalorder %s19, 1
    %p63 = por %p61, %p62
    %p64 = scmp.ne.s32.totalorder %s53, %s54
    %p65 = scmp.eq.s32.totalorder %s19, 0
    %p66 = por %p64, %p65
    %p67 = scmp.ne.s32.totalorder %s53, %s54
    %p68 = scmp.eq.s32.totalorder %s20, 1
    %p69 = por %p67, %p68
    %p71 = scmp.ne.s32.totalorder %s54, %s70
    %p72 = scmp.eq.s32.totalorder %s20, 0
    %p73 = por %p71, %p72
    %s74 = ssub.s32 %s14, %s21
    %p75 = scmp.eq.s32.totalorder %s74, 0
    %s77 = sadd.s32 %s76, 1
    %s78 = scalar_select %p75, %s76, %s77
    %p81 = pneg %p75
    %p82 = scmp.eq.s32.totalorder %s14, 1
    %p83 = por %p81, %p82
    %p84 = scmp.ne.s32.totalorder %s76, %s79
    %p85 = scmp.eq.s32.totalorder %s14, 0
    %p86 = por %p84, %p85
    %p87 = scmp.ne.s32.totalorder %s76, %s79
    %p88 = scmp.eq.s32.totalorder %s19, 1
    %p89 = por %p87, %p88
    %p90 = scmp.ne.s32.totalorder %s79, %s80
    %p91 = scmp.eq.s32.totalorder %s19, 0
    %p92 = por %p90, %p91
    %p93 = scmp.ne.s32.totalorder %s79, %s80
    %p94 = scmp.eq.s32.totalorder %s20, 1
    %p95 = por %p93, %p94
    %p97 = scmp.ne.s32.totalorder %s80, %s96
    %p98 = scmp.eq.s32.totalorder %s20, 0
    %p99 = por %p97, %p98
    %s100 = ssub.s32 %s14, %s21
    %p101 = scmp.eq.s32.totalorder %s100, 0
    %s103 = sadd.s32 %s102, 1
    %s104 = scalar_select %p101, %s102, %s103
    %p107 = pneg %p101
    %p108 = scmp.eq.s32.totalorder %s14, 1
    %p109 = por %p107, %p108
    %p110 = scmp.ne.s32.totalorder %s102, %s105
    %p111 = scmp.eq.s32.totalorder %s14, 0
    %p112 = por %p110, %p111
    %p113 = scmp.ne.s32.totalorder %s102, %s105
    %p114 = scmp.eq.s32.totalorder %s19, 1
    %p115 = por %p113, %p114
    %p116 = scmp.ne.s32.totalorder %s105, %s106
    %p117 = scmp.eq.s32.totalorder %s19, 0
    %p118 = por %p116, %p117
    %p119 = scmp.ne.s32.totalorder %s105, %s106
    %p120 = scmp.eq.s32.totalorder %s20, 1
    %p121 = por %p119, %p120
    %p123 = scmp.ne.s32.totalorder %s106, %s122
    %p124 = scmp.eq.s32.totalorder %s20, 0
    %p125 = por %p123, %p124
    %s127 = sadd.s32 %s126, 1
    %p130 = scmp.eq.s32.totalorder %s14, 1
    %p131 = scmp.ne.s32.totalorder %s126, %s128
    %p132 = scmp.eq.s32.totalorder %s14, 0
    %p133 = por %p131, %p132
    %p134 = scmp.ne.s32.totalorder %s126, %s128
    %p135 = scmp.eq.s32.totalorder %s19, 1
    %p136 = por %p134, %p135
    %p137 = scmp.ne.s32.totalorder %s128, %s129
    %p138 = scmp.eq.s32.totalorder %s19, 0
    %p139 = por %p137, %p138
    %p140 = scmp.ne.s32.totalorder %s128, %s129
    %p141 = scmp.eq.s32.totalorder %s20, 1
    %p142 = por %p140, %p141
    %p144 = scmp.ne.s32.totalorder %s129, %s143
    %p145 = scmp.eq.s32.totalorder %s20, 0
    %p146 = por %p144, %p145
    %s147 = ssub.s32 %s14, %s21
    %p148 = scmp.eq.s32.totalorder %s147, 0
    %s150 = sadd.s32 %s149, 1
    %s151 = scalar_select %p148, %s149, %s150
    %p154 = pneg %p148
    %p155 = scmp.eq.s32.totalorder %s14, 1
    %p156 = por %p154, %p155
    %p157 = scmp.ne.s32.totalorder %s149, %s152
    %p158 = scmp.eq.s32.totalorder %s14, 0
    %p159 = por %p157, %p158
    %p160 = scmp.ne.s32.totalorder %s149, %s152
    %p161 = scmp.eq.s32.totalorder %s19, 1
    %p162 = por %p160, %p161
    %p163 = scmp.ne.s32.totalorder %s152, %s153
    %p164 = scmp.eq.s32.totalorder %s19, 0
    %p165 = por %p163, %p164
    %p166 = scmp.ne.s32.totalorder %s152, %s153
    %p167 = scmp.eq.s32.totalorder %s20, 1
    %p168 = por %p166, %p167
    %p170 = scmp.ne.s32.totalorder %s153, %s169
    %p171 = scmp.eq.s32.totalorder %s20, 0
    %p172 = por %p170, %p171
    %s173 = ssub.s32 %s14, %s21
    %p174 = scmp.eq.s32.totalorder %s173, 0
    %s176 = sadd.s32 %s175, 1
    %s177 = scalar_select %p174, %s175, %s176
    %p180 = pneg %p174
    %p181 = scmp.eq.s32.totalorder %s14, 1
    %p182 = por %p180, %p181
    %p183 = scmp.ne.s32.totalorder %s175, %s178
    %p184 = scmp.eq.s32.totalorder %s14, 0
    %p185 = por %p183, %p184
    %p186 = scmp.ne.s32.totalorder %s175, %s178
    %p187 = scmp.eq.s32.totalorder %s19, 1
    %p188 = por %p186, %p187
    %p189 = scmp.ne.s32.totalorder %s178, %s179
    %p190 = scmp.eq.s32.totalorder %s19, 0
    %p191 = por %p189, %p190
    %p192 = scmp.ne.s32.totalorder %s178, %s179
    %p193 = scmp.eq.s32.totalorder %s20, 1
    %p194 = por %p192, %p193
    %p196 = scmp.ne.s32.totalorder %s179, %s195
    %p197 = scmp.eq.s32.totalorder %s20, 0
    %p198 = por %p196, %p197
    %s199 = ssub.s32 %s14, %s21
    %p200 = scmp.eq.s32.totalorder %s199, 0
    %s202 = sadd.s32 %s201, 1
    %s203 = scalar_select %p200, %s201, %s202
    %p206 = pneg %p200
    %p207 = scmp.eq.s32.totalorder %s14, 1
    %p208 = por %p206, %p207
    %p209 = scmp.ne.s32.totalorder %s201, %s204
    %p210 = scmp.eq.s32.totalorder %s14, 0
    %p211 = por %p209, %p210
    %p212 = scmp.ne.s32.totalorder %s201, %s204
    %p213 = scmp.eq.s32.totalorder %s19, 1
    %p214 = por %p212, %p213
    %p215 = scmp.ne.s32.totalorder %s204, %s205
    %p216 = scmp.eq.s32.totalorder %s19, 0
    %p217 = por %p215, %p216
    %p218 = scmp.ne.s32.totalorder %s204, %s205
    %p219 = scmp.eq.s32.totalorder %s20, 1
    %p220 = por %p218, %p219
    %p222 = scmp.ne.s32.totalorder %s205, %s221
    %p223 = scmp.eq.s32.totalorder %s20, 0
    %p224 = por %p222, %p223
    %p225 = scmp.le.s32.totalorder 1, %s14
    %p226 = scmp.lt.s32.totalorder %s14, 3
    %p227 = pnand %p225, %p226
    %p228 = pneg %p227
    // Predicated region
    $region9: #{encoder_layer.2} parent=5 // pred_check
      _
    $region10: #{encoder_layer.2} parent=5 // pred_check_branch
      %230 = sbr.rel (%p227) target = $region12
    $region11: #{encoder_layer.2} parent=5 // pred_region
      %s231 = ssub.s32 %s14, 1
      // Predicated region
      $region13: #{encoder_layer.2} parent=11 // pred_check
        %p232 = pneg %p139
      $region14: #{encoder_layer.2} parent=11 // pred_check_branch
        %234 = sbr.rel (%p232) target = $region16
      $region15: #{encoder_layer.2} parent=11 // pred_region
        _
      $region16: #{encoder_layer.2} parent=11 // pred_fallthru
        _
    $region12: #{encoder_layer.2} parent=5 // pred_fallthru
      _
    %p235 = scmp.lt.s32.totalorder %s14, 2
    // Predicated region
    $region17: #{encoder_layer.2} parent=5 // pred_check
      %p236 = pneg %p235
    $region18: #{encoder_layer.2} parent=5 // pred_check_branch
      %238 = sbr.rel (%p236) target = $region20
    $region19: #{encoder_layer.2} parent=5 // pred_region
      // Predicated region
      $region21: #{encoder_layer.2} parent=19 // pred_check
        %p239 = pneg %p34
      $region22: #{encoder_layer.2} parent=19 // pred_check_branch
        %241 = sbr.rel (%p239) target = $region24
      $region23: #{encoder_layer.2} parent=19 // pred_region
        %p242 = scmp.lt.s32.totalorder %s14, 1
        %s243 = scalar_select %p242, %s14, 1
        %s244 = smul.addr %s243, 20
        %s245 = smul.addr %s244, 8
        %s246 = scalar_lea.vmem %s0, %s245
      $region24: #{encoder_layer.2} parent=19 // pred_fallthru
        _
      // Predicated region
      $region25: #{encoder_layer.2} parent=19 // pred_check
        %p247 = pneg %p60
      $region26: #{encoder_layer.2} parent=19 // pred_check_branch
        %249 = sbr.rel (%p247) target = $region28
      $region27: #{encoder_layer.2} parent=19 // pred_region
        %p250 = scmp.lt.s32.totalorder %s14, 1
        %s251 = scalar_select %p250, %s14, 1
        %s252 = smul.addr %s251, 20
        %s253 = smul.addr %s252, 8
        %s254 = scalar_lea.vmem %s1, %s253
      $region28: #{encoder_layer.2} parent=19 // pred_fallthru
        _
      // Predicated region
      $region29: #{encoder_layer.2} parent=19 // pred_check
        %p255 = pneg %p86
      $region30: #{encoder_layer.2} parent=19 // pred_check_branch
        %257 = sbr.rel (%p255) target = $region32
      $region31: #{encoder_layer.2} parent=19 // pred_region
        %p258 = scmp.lt.s32.totalorder %s14, 1
        %s259 = scalar_select %p258, %s14, 1
        %s260 = smul.addr %s259, 18
        %s261 = smul.addr %s260, 8
        %s262 = scalar_lea.vmem %s2, %s261
      $region32: #{encoder_layer.2} parent=19 // pred_fallthru
        _
      // Predicated region
      $region33: #{encoder_layer.2} parent=19 // pred_check
        %p263 = pneg %p112
      $region34: #{encoder_layer.2} parent=19 // pred_check_branch
        %265 = sbr.rel (%p263) target = $region36
      $region35: #{encoder_layer.2} parent=19 // pred_region
        %p266 = scmp.lt.s32.totalorder %s14, 1
        %s267 = scalar_select %p266, %s14, 1
        %s268 = smul.addr %s267, 18
        %s269 = smul.addr %s268, 8
        %s270 = scalar_lea.vmem %s3, %s269
      $region36: #{encoder_layer.2} parent=19 // pred_fallthru
        _
    $region20: #{encoder_layer.2} parent=5 // pred_fallthru
      _
    %p271 = scmp.le.s32.totalorder 1, %s14
    %p272 = scmp.lt.s32.totalorder %s14, 3
    %p273 = pnand %p271, %p272
    %p274 = pneg %p273
    // Predicated region
    $region37: #{encoder_layer.2} parent=5 // pred_check
      _
    $region38: #{encoder_layer.2} parent=5 // pred_check_branch
      %276 = sbr.rel (%p273) target = $region40
    $region39: #{encoder_layer.2} parent=5 // pred_region
      %s277 = ssub.s32 %s14, 1
      %p278 = scmp.lt.s32.totalorder %s19, 1
      %s279 = scalar_select %p278, %s19, 1
      %s280 = smul.addr %s279, 20
      %s281 = smul.addr %s280, 8
      %s282 = scalar_lea.vmem %s0, %s281
      %p283 = pneg %p40
      %p284 = pneg %p37
      %p285 = scmp.lt.s32.totalorder %s19, 1
      %s286 = scalar_select %p285, %s19, 1
      %s287 = smul.addr %s286, 20
      %s288 = smul.addr %s287, 8
      %s289 = scalar_lea.vmem %s1, %s288
      %p290 = pneg %p66
      %p291 = pneg %p63
      %p292 = scmp.lt.s32.totalorder %s19, 1
      %s293 = scalar_select %p292, %s19, 1
      %s294 = smul.addr %s293, 18
      %s295 = smul.addr %s294, 8
      %s296 = scalar_lea.vmem %s2, %s295
      %p297 = pneg %p92
      %p298 = pneg %p89
      %p299 = scmp.lt.s32.totalorder %s19, 1
      %s300 = scalar_select %p299, %s19, 1
      %s301 = smul.addr %s300, 18
      %s302 = smul.addr %s301, 8
      %s303 = scalar_lea.vmem %s3, %s302
      %p304 = pneg %p118
      %p305 = pneg %p115
      %p306 = pneg %p139
      %p307 = pneg %p136
      %p308 = pneg %p165
      %p309 = pneg %p162
      %p310 = scmp.lt.s32.totalorder %s19, 1
      %s311 = scalar_select %p310, %s19, 1
      %s312 = smul.addr %s311, 8
      %s313 = smul.addr %s312, 4
      %s314 = scalar_lea.vmem %s5, %s313
      %p315 = pneg %p191
      %p316 = pneg %p188
      %p317 = scmp.lt.s32.totalorder %s19, 1
      %s318 = scalar_select %p317, %s19, 1
      %s319 = smul.addr %s318, 8
      %s320 = scalar_lea.vmem %s6, %s319
      %p321 = pneg %p217
      %p322 = pneg %p214
      %p323 = scmp.lt.s32.totalorder %s19, 1
      %s324 = scalar_select %p323, %s19, 1
      %s325 = smul.addr %s324, 8
      %s326 = scalar_lea.vmem %s7, %s325
      %p327 = scmp.lt.s32.totalorder %s19, 1
      %s328 = scalar_select %p327, %s19, 1
      %s329 = smul.addr %s328, 20
      %s330 = smul.addr %s329, 8
      %s331 = scalar_lea.vmem %s0, %s330
      %p332 = scmp.lt.s32.totalorder %s19, 1
      %s333 = scalar_select %p332, %s19, 1
      %s334 = smul.addr %s333, 20
      %s335 = smul.addr %s334, 8
      %s336 = scalar_lea.vmem %s1, %s335
      %p337 = scmp.lt.s32.totalorder %s19, 1
      %s338 = scalar_select %p337, %s19, 1
      %s339 = smul.addr %s338, 18
      %s340 = smul.addr %s339, 8
      %s341 = scalar_lea.vmem %s2, %s340
      %p342 = scmp.lt.s32.totalorder %s19, 1
      %s343 = scalar_select %p342, %s19, 1
      %s344 = smul.addr %s343, 18
      %s345 = smul.addr %s344, 8
      %s346 = scalar_lea.vmem %s3, %s345
      %p347 = scmp.lt.s32.totalorder %s19, 1
      %s348 = scalar_select %p347, %s19, 1
      %s349 = smul.addr %s348, 8
      %s350 = smul.addr %s349, 4
      %s351 = scalar_lea.vmem %s5, %s350
      %p352 = scmp.lt.s32.totalorder %s19, 1
      %s353 = scalar_select %p352, %s19, 1
      %s354 = smul.addr %s353, 8
      %s355 = scalar_lea.vmem %s6, %s354
      %p356 = scmp.lt.s32.totalorder %s19, 1
      %s357 = scalar_select %p356, %s19, 1
      %s358 = smul.addr %s357, 8
      %s359 = scalar_lea.vmem %s7, %s358
      %v360 = vld [vmem:[%s331] sm:$0xff]
      %v361 = vld [vmem:[%s331 + $0x10] sm:$0xff]
      %v362 = vld [vmem:[%s331 + $0x20] sm:$0xff]
      %v363 = vld [vmem:[%s331 + $0x30] sm:$0xff]
      %v364 = vld [vmem:[%s331 + $0x40] sm:$0xff]
      %v365 = vld [vmem:[%s331 + $0x50] sm:$0xff]
      %v366 = vld [vmem:[%s331 + $0x60] sm:$0xff]
      %v367 = vld [vmem:[%s331 + $0x70] sm:$0xff]
      %v368 = vld [vmem:[%s4] sm:$0xf]
      %v369 = vld [vmem:[%s336] sm:$0xff]
      %v370 = vld [vmem:[%s336 + $0x10] sm:$0xff]
      %v371 = vld [vmem:[%s336 + $0x20] sm:$0xff]
      %v372 = vld [vmem:[%s336 + $0x30] sm:$0xff]
      %v373 = vld [vmem:[%s336 + $0x40] sm:$0xff]
      %v374 = vld [vmem:[%s336 + $0x50] sm:$0xff]
      %v375 = vld [vmem:[%s336 + $0x60] sm:$0xff]
      %v376 = vld [vmem:[%s336 + $0x70] sm:$0xff]
      %s377 = scalar_lea.vmem %s4, 4
      %v378 = vld [vmem:[%s377] sm:$0xf]
      %vm379 = vcmask 31744
      %v381 = vsel %vm379, %v369, 0
      %v384 = vsel %vm379, %v370, 0
      %v387 = vsel %vm379, %v371, 0
      %v390 = vsel %vm379, %v372, 0
      %v393 = vsel %vm379, %v373, 0
      %v396 = vsel %vm379, %v374, 0
      %v399 = vsel %vm379, %v375, 0
      %v402 = vsel %vm379, %v376, 0
      %vm404 = vcmask 1043456
      %v406 = vsel %vm404, %v378, 0
      %408 = vmatpush.msra.mxu0 0.0
      %409 = vmatpush.msra.mxu0 0.0
      %410 = vmatpush.msra.mxu0 0.0
      %411 = vmatpush.msra.mxu0 0.0
      %412 = vmatpush.msra.mxu0 0.0
      %413 = vmatpush.msra.mxu0 0.0
      %414 = vmatpush.msra.mxu0 0.0
      %415 = vmatpush.msra.mxu0 0.0
      %416 = vmatpush.msra.mxu0 0.0
      %417 = vmatpush.msra.mxu0 0.0
      %418 = vmatpush.msra.mxu0 0.0
      %419 = vmatpush.msra.mxu0 0.0
      %420 = vmatpush.msra.mxu0 0.0
      %421 = vmatpush.msra.mxu0 0.0
      %422 = vmatpush.msra.mxu0 0.0
      %423 = vmatpush.msra.mxu0 %v406
      %424 = vmatmul.f32.gmra.mxu0 %v381
      %v425 = vpop.f32.mrf.mxu0
      %v426 = vadd.f32 0.0, %v425
      %427 = vmatmul.f32.gmra.mxu0 %v384
      %v428 = vpop.f32.mrf.mxu0
      %v429 = vadd.f32 0.0, %v428
      %430 = vmatmul.f32.gmra.mxu0 %v387
      %v431 = vpop.f32.mrf.mxu0
      %v432 = vadd.f32 0.0, %v431
      %433 = vmatmul.f32.gmra.mxu0 %v390
      %v434 = vpop.f32.mrf.mxu0
      %v435 = vadd.f32 0.0, %v434
      %436 = vmatmul.f32.gmra.mxu0 %v393
      %v437 = vpop.f32.mrf.mxu0
      %v438 = vadd.f32 0.0, %v437
      %439 = vmatmul.f32.gmra.mxu0 %v396
      %v440 = vpop.f32.mrf.mxu0
      %v441 = vadd.f32 0.0, %v440
      %442 = vmatmul.f32.gmra.mxu0 %v399
      %v443 = vpop.f32.mrf.mxu0
      %v444 = vadd.f32 0.0, %v443
      %445 = vmatmul.f32.gmra.mxu0 %v402
      %v446 = vpop.f32.mrf.mxu0
      %v447 = vadd.f32 0.0, %v446
      %448 = vdwg.mxu0
      %v450 = vsel %vm379, %v360, 0
      %v453 = vsel %vm379, %v361, 0
      %v456 = vsel %vm379, %v362, 0
      %v459 = vsel %vm379, %v363, 0
      %v462 = vsel %vm379, %v364, 0
      %v465 = vsel %vm379, %v365, 0
      %v468 = vsel %vm379, %v366, 0
      %v471 = vsel %vm379, %v367, 0
      %v474 = vsel %vm404, %v368, 0
      %476 = vmatpush.msra.mxu0 0.0
      %477 = vmatpush.msra.mxu0 0.0
      %478 = vmatpush.msra.mxu0 0.0
      %479 = vmatpush.msra.mxu0 0.0
      %480 = vmatpush.msra.mxu0 0.0
      %481 = vmatpush.msra.mxu0 0.0
      %482 = vmatpush.msra.mxu0 0.0
      %483 = vmatpush.msra.mxu0 0.0
      %484 = vmatpush.msra.mxu0 0.0
      %485 = vmatpush.msra.mxu0 0.0
      %486 = vmatpush.msra.mxu0 0.0
      %487 = vmatpush.msra.mxu0 0.0
      %488 = vmatpush.msra.mxu0 0.0
      %489 = vmatpush.msra.mxu0 0.0
      %490 = vmatpush.msra.mxu0 0.0
      %491 = vmatpush.msra.mxu0 %v474
      %492 = vmatmul.f32.gmra.mxu0 %v450
      %v493 = vpop.f32.mrf.mxu0
      %v494 = vadd.f32 %v426, %v493
      %495 = vmatmul.f32.gmra.mxu0 %v453
      %v496 = vpop.f32.mrf.mxu0
      %v497 = vadd.f32 %v429, %v496
      %498 = vmatmul.f32.gmra.mxu0 %v456
      %v499 = vpop.f32.mrf.mxu0
      %v500 = vadd.f32 %v432, %v499
      %501 = vmatmul.f32.gmra.mxu0 %v459
      %v502 = vpop.f32.mrf.mxu0
      %v503 = vadd.f32 %v435, %v502
      %504 = vmatmul.f32.gmra.mxu0 %v462
      %v505 = vpop.f32.mrf.mxu0
      %v506 = vadd.f32 %v438, %v505
      %507 = vmatmul.f32.gmra.mxu0 %v465
      %v508 = vpop.f32.mrf.mxu0
      %v509 = vadd.f32 %v441, %v508
      %510 = vmatmul.f32.gmra.mxu0 %v468
      %v511 = vpop.f32.mrf.mxu0
      %v512 = vadd.f32 %v444, %v511
      %513 = vmatmul.f32.gmra.mxu0 %v471
      %v514 = vpop.f32.mrf.mxu0
      %v515 = vadd.f32 %v447, %v514
      %516 = vdwg.mxu0
      %v517 = vld [vmem:[%s331 + $0x1] sm:$0xff]
      %v518 = vld [vmem:[%s331 + $0x11] sm:$0xff]
      %v519 = vld [vmem:[%s331 + $0x21] sm:$0xff]
      %v520 = vld [vmem:[%s331 + $0x31] sm:$0xff]
      %v521 = vld [vmem:[%s331 + $0x41] sm:$0xff]
      %v522 = vld [vmem:[%s331 + $0x51] sm:$0xff]
      %v523 = vld [vmem:[%s331 + $0x61] sm:$0xff]
      %v524 = vld [vmem:[%s331 + $0x71] sm:$0xff]
      %s525 = scalar_lea.vmem %s4, 8
      %v526 = vld [vmem:[%s525] sm:$0xf]
      %v528 = vsel %vm379, %v517, 0
      %v531 = vsel %vm379, %v518, 0
      %v534 = vsel %vm379, %v519, 0
      %v537 = vsel %vm379, %v520, 0
      %v540 = vsel %vm379, %v521, 0
      %v543 = vsel %vm379, %v522, 0
      %v546 = vsel %vm379, %v523, 0
      %v549 = vsel %vm379, %v524, 0
      %v552 = vsel %vm404, %v526, 0
      %554 = vmatpush.msra.mxu0 0.0
      %555 = vmatpush.msra.mxu0 0.0
      %556 = vmatpush.msra.mxu0 0.0
      %557 = vmatpush.msra.mxu0 0.0
      %558 = vmatpush.msra.mxu0 0.0
      %559 = vmatpush.msra.mxu0 0.0
      %560 = vmatpush.msra.mxu0 0.0
      %561 = vmatpush.msra.mxu0 0.0
      %562 = vmatpush.msra.mxu0 0.0
      %563 = vmatpush.msra.mxu0 0.0
      %564 = vmatpush.msra.mxu0 0.0
      %565 = vmatpush.msra.mxu0 0.0
      %566 = vmatpush.msra.mxu0 0.0
      %567 = vmatpush.msra.mxu0 0.0
      %568 = vmatpush.msra.mxu0 0.0
      %569 = vmatpush.msra.mxu0 %v552
      %570 = vmatmul.f32.gmra.mxu0 %v528
      %v571 = vpop.f32.mrf.mxu0
      %v572 = vadd.f32 0.0, %v571
      %573 = vmatmul.f32.gmra.mxu0 %v531
      %v574 = vpop.f32.mrf.mxu0
      %v575 = vadd.f32 0.0, %v574
      %576 = vmatmul.f32.gmra.mxu0 %v534
      %v577 = vpop.f32.mrf.mxu0
      %v578 = vadd.f32 0.0, %v577
      %579 = vmatmul.f32.gmra.mxu0 %v537
      %v580 = vpop.f32.mrf.mxu0
      %v581 = vadd.f32 0.0, %v580
      %582 = vmatmul.f32.gmra.mxu0 %v540
      %v583 = vpop.f32.mrf.mxu0
      %v584 = vadd.f32 0.0, %v583
      %585 = vmatmul.f32.gmra.mxu0 %v543
      %v586 = vpop.f32.mrf.mxu0
      %v587 = vadd.f32 0.0, %v586
      %588 = vmatmul.f32.gmra.mxu0 %v546
      %v589 = vpop.f32.mrf.mxu0
      %v590 = vadd.f32 0.0, %v589
      %591 = vmatmul.f32.gmra.mxu0 %v549
      %v592 = vpop.f32.mrf.mxu0
      %v593 = vadd.f32 0.0, %v592
      %594 = vdwg.mxu0
      %v595 = vadd.f32 %v494, %v572
      %v596 = vadd.f32 %v497, %v575
      %v597 = vadd.f32 %v500, %v578
      %v598 = vadd.f32 %v503, %v581
      %v599 = vadd.f32 %v506, %v584
      %v600 = vadd.f32 %v509, %v587
      %v601 = vadd.f32 %v512, %v590
      %v602 = vadd.f32 %v515, %v593
      %v603 = vld [vmem:[%s336 + $0x1] sm:$0xff]
      %v604 = vld [vmem:[%s336 + $0x11] sm:$0xff]
      %v605 = vld [vmem:[%s336 + $0x21] sm:$0xff]
      %v606 = vld [vmem:[%s336 + $0x31] sm:$0xff]
      %v607 = vld [vmem:[%s336 + $0x41] sm:$0xff]
      %v608 = vld [vmem:[%s336 + $0x51] sm:$0xff]
      %v609 = vld [vmem:[%s336 + $0x61] sm:$0xff]
      %v610 = vld [vmem:[%s336 + $0x71] sm:$0xff]
      %s611 = scalar_lea.vmem %s4, 12
      %v612 = vld [vmem:[%s611] sm:$0xf]
      %v614 = vsel %vm379, %v603, 0
      %v617 = vsel %vm379, %v604, 0
      %v620 = vsel %vm379, %v605, 0
      %v623 = vsel %vm379, %v606, 0
      %v626 = vsel %vm379, %v607, 0
      %v629 = vsel %vm379, %v608, 0
      %v632 = vsel %vm379, %v609, 0
      %v635 = vsel %vm379, %v610, 0
      %v638 = vsel %vm404, %v612, 0
      %640 = vmatpush.msra.mxu0 0.0
      %641 = vmatpush.msra.mxu0 0.0
      %642 = vmatpush.msra.mxu0 0.0
      %643 = vmatpush.msra.mxu0 0.0
      %644 = vmatpush.msra.mxu0 0.0
      %645 = vmatpush.msra.mxu0 0.0
      %646 = vmatpush.msra.mxu0 0.0
      %647 = vmatpush.msra.mxu0 0.0
      %648 = vmatpush.msra.mxu0 0.0
      %649 = vmatpush.msra.mxu0 0.0
      %650 = vmatpush.msra.mxu0 0.0
      %651 = vmatpush.msra.mxu0 0.0
      %652 = vmatpush.msra.mxu0 0.0
      %653 = vmatpush.msra.mxu0 0.0
      %654 = vmatpush.msra.mxu0 0.0
      %655 = vmatpush.msra.mxu0 %v638
      %656 = vmatmul.f32.gmra.mxu0 %v614
      %v657 = vpop.f32.mrf.mxu0
      %v658 = vadd.f32 0.0, %v657
      %659 = vmatmul.f32.gmra.mxu0 %v617
      %v660 = vpop.f32.mrf.mxu0
      %v661 = vadd.f32 0.0, %v660
      %662 = vmatmul.f32.gmra.mxu0 %v620
      %v663 = vpop.f32.mrf.mxu0
      %v664 = vadd.f32 0.0, %v663
      %665 = vmatmul.f32.gmra.mxu0 %v623
      %v666 = vpop.f32.mrf.mxu0
      %v667 = vadd.f32 0.0, %v666
      %668 = vmatmul.f32.gmra.mxu0 %v626
      %v669 = vpop.f32.mrf.mxu0
      %v670 = vadd.f32 0.0, %v669
      %671 = vmatmul.f32.gmra.mxu0 %v629
      %v672 = vpop.f32.mrf.mxu0
      %v673 = vadd.f32 0.0, %v672
      %674 = vmatmul.f32.gmra.mxu0 %v632
      %v675 = vpop.f32.mrf.mxu0
      %v676 = vadd.f32 0.0, %v675
      %677 = vmatmul.f32.gmra.mxu0 %v635
      %v678 = vpop.f32.mrf.mxu0
      %v679 = vadd.f32 0.0, %v678
      %680 = vdwg.mxu0
      %v681 = vadd.f32 %v595, %v658
      %v682 = vadd.f32 %v596, %v661
      %v683 = vadd.f32 %v597, %v664
      %v684 = vadd.f32 %v598, %v667
      %v685 = vadd.f32 %v599, %v670
      %v686 = vadd.f32 %v600, %v673
      %v687 = vadd.f32 %v601, %v676
      %v688 = vadd.f32 %v602, %v679
      %v689 = vld [vmem:[%s331 + $0x2] sm:$0xff]
      %v690 = vld [vmem:[%s331 + $0x12] sm:$0xff]
      %v691 = vld [vmem:[%s331 + $0x22] sm:$0xff]
      %v692 = vld [vmem:[%s331 + $0x32] sm:$0xff]
      %v693 = vld [vmem:[%s331 + $0x42] sm:$0xff]
      %v694 = vld [vmem:[%s331 + $0x52] sm:$0xff]
      %v695 = vld [vmem:[%s331 + $0x62] sm:$0xff]
      %v696 = vld [vmem:[%s331 + $0x72] sm:$0xff]
      %s697 = scalar_lea.vmem %s4, 16
      %v698 = vld [vmem:[%s697] sm:$0xf]
      %v700 = vsel %vm379, %v689, 0
      %v703 = vsel %vm379, %v690, 0
      %v706 = vsel %vm379, %v691, 0
      %v709 = vsel %vm379, %v692, 0
      %v712 = vsel %vm379, %v693, 0
      %v715 = vsel %vm379, %v694, 0
      %v718 = vsel %vm379, %v695, 0
      %v721 = vsel %vm379, %v696, 0
      %v724 = vsel %vm404, %v698, 0
      %726 = vmatpush.msra.mxu0 0.0
      %727 = vmatpush.msra.mxu0 0.0
      %728 = vmatpush.msra.mxu0 0.0
      %729 = vmatpush.msra.mxu0 0.0
      %730 = vmatpush.msra.mxu0 0.0
      %731 = vmatpush.msra.mxu0 0.0
      %732 = vmatpush.msra.mxu0 0.0
      %733 = vmatpush.msra.mxu0 0.0
      %734 = vmatpush.msra.mxu0 0.0
      %735 = vmatpush.msra.mxu0 0.0
      %736 = vmatpush.msra.mxu0 0.0
      %737 = vmatpush.msra.mxu0 0.0
      %738 = vmatpush.msra.mxu0 0.0
      %739 = vmatpush.msra.mxu0 0.0
      %740 = vmatpush.msra.mxu0 0.0
      %741 = vmatpush.msra.mxu0 %v724
      %742 = vmatmul.f32.gmra.mxu0 %v700
      %v743 = vpop.f32.mrf.mxu0
      %v744 = vadd.f32 0.0, %v743
      %745 = vmatmul.f32.gmra.mxu0 %v703
      %v746 = vpop.f32.mrf.mxu0
      %v747 = vadd.f32 0.0, %v746
      %748 = vmatmul.f32.gmra.mxu0 %v706
      %v749 = vpop.f32.mrf.mxu0
      %v750 = vadd.f32 0.0, %v749
      %751 = vmatmul.f32.gmra.mxu0 %v709
      %v752 = vpop.f32.mrf.mxu0
      %v753 = vadd.f32 0.0, %v752
      %754 = vmatmul.f32.gmra.mxu0 %v712
      %v755 = vpop.f32.mrf.mxu0
      %v756 = vadd.f32 0.0, %v755
      %757 = vmatmul.f32.gmra.mxu0 %v715
      %v758 = vpop.f32.mrf.mxu0
      %v759 = vadd.f32 0.0, %v758
      %760 = vmatmul.f32.gmra.mxu0 %v718
      %v761 = vpop.f32.mrf.mxu0
      %v762 = vadd.f32 0.0, %v761
      %763 = vmatmul.f32.gmra.mxu0 %v721
      %v764 = vpop.f32.mrf.mxu0
      %v765 = vadd.f32 0.0, %v764
      %766 = vdwg.mxu0
      %v767 = vadd.f32 %v681, %v744
      %v768 = vadd.f32 %v682, %v747
      %v769 = vadd.f32 %v683, %v750
      %v770 = vadd.f32 %v684, %v753
      %v771 = vadd.f32 %v685, %v756
      %v772 = vadd.f32 %v686, %v759
      %v773 = vadd.f32 %v687, %v762
      %v774 = vadd.f32 %v688, %v765
      %v775 = vld [vmem:[%s341] sm:$0xff]
      %v776 = vld [vmem:[%s341 + $0x10] sm:$0xff]
      %v777 = vld [vmem:[%s341 + $0x20] sm:$0xff]
      %v778 = vld [vmem:[%s341 + $0x30] sm:$0xff]
      %v779 = vld [vmem:[%s341 + $0x40] sm:$0xff]
      %v780 = vld [vmem:[%s341 + $0x50] sm:$0xff]
      %v781 = vld [vmem:[%s341 + $0x60] sm:$0xff]
      %v782 = vld [vmem:[%s341 + $0x70] sm:$0xff]
      %s783 = scalar_lea.vmem %s4, 20
      %v784 = vld [vmem:[%s783] sm:$0xf]
      %v786 = vsel %vm379, %v775, 0
      %v789 = vsel %vm379, %v776, 0
      %v792 = vsel %vm379, %v777, 0
      %v795 = vsel %vm379, %v778, 0
      %v798 = vsel %vm379, %v779, 0
      %v801 = vsel %vm379, %v780, 0
      %v804 = vsel %vm379, %v781, 0
      %v807 = vsel %vm379, %v782, 0
      %v810 = vsel %vm404, %v784, 0
      %812 = vmatpush.msra.mxu0 0.0
      %813 = vmatpush.msra.mxu0 0.0
      %814 = vmatpush.msra.mxu0 0.0
      %815 = vmatpush.msra.mxu0 0.0
      %816 = vmatpush.msra.mxu0 0.0
      %817 = vmatpush.msra.mxu0 0.0
      %818 = vmatpush.msra.mxu0 0.0
      %819 = vmatpush.msra.mxu0 0.0
      %820 = vmatpush.msra.mxu0 0.0
      %821 = vmatpush.msra.mxu0 0.0
      %822 = vmatpush.msra.mxu0 0.0
      %823 = vmatpush.msra.mxu0 0.0
      %824 = vmatpush.msra.mxu0 0.0
      %825 = vmatpush.msra.mxu0 0.0
      %826 = vmatpush.msra.mxu0 0.0
      %827 = vmatpush.msra.mxu0 %v810
      %828 = vmatmul.f32.gmra.mxu0 %v786
      %v829 = vpop.f32.mrf.mxu0
      %v830 = vadd.f32 0.0, %v829
      %831 = vmatmul.f32.gmra.mxu0 %v789
      %v832 = vpop.f32.mrf.mxu0
      %v833 = vadd.f32 0.0, %v832
      %834 = vmatmul.f32.gmra.mxu0 %v792
      %v835 = vpop.f32.mrf.mxu0
      %v836 = vadd.f32 0.0, %v835
      %837 = vmatmul.f32.gmra.mxu0 %v795
      %v838 = vpop.f32.mrf.mxu0
      %v839 = vadd.f32 0.0, %v838
      %840 = vmatmul.f32.gmra.mxu0 %v798
      %v841 = vpop.f32.mrf.mxu0
      %v842 = vadd.f32 0.0, %v841
      %843 = vmatmul.f32.gmra.mxu0 %v801
      %v844 = vpop.f32.mrf.mxu0
      %v845 = vadd.f32 0.0, %v844
      %846 = vmatmul.f32.gmra.mxu0 %v804
      %v847 = vpop.f32.mrf.mxu0
      %v848 = vadd.f32 0.0, %v847
      %849 = vmatmul.f32.gmra.mxu0 %v807
      %v850 = vpop.f32.mrf.mxu0
      %v851 = vadd.f32 0.0, %v850
      %852 = vdwg.mxu0
      %v853 = vadd.f32 %v767, %v830
      %v854 = vadd.f32 %v768, %v833
      %v855 = vadd.f32 %v769, %v836
      %v856 = vadd.f32 %v770, %v839
      %v857 = vadd.f32 %v771, %v842
      %v858 = vadd.f32 %v772, %v845
      %v859 = vadd.f32 %v773, %v848
      %v860 = vadd.f32 %v774, %v851
      %v861 = vld [vmem:[%s346] sm:$0xff]
      %v862 = vld [vmem:[%s346 + $0x10] sm:$0xff]
      %v863 = vld [vmem:[%s346 + $0x20] sm:$0xff]
      %v864 = vld [vmem:[%s346 + $0x30] sm:$0xff]
      %v865 = vld [vmem:[%s346 + $0x40] sm:$0xff]
      %v866 = vld [vmem:[%s346 + $0x50] sm:$0xff]
      %v867 = vld [vmem:[%s346 + $0x60] sm:$0xff]
      %v868 = vld [vmem:[%s346 + $0x70] sm:$0xff]
      %s869 = scalar_lea.vmem %s4, 24
      %v870 = vld [vmem:[%s869] sm:$0xf]
      %v872 = vsel %vm379, %v861, 0
      %v875 = vsel %vm379, %v862, 0
      %v878 = vsel %vm379, %v863, 0
      %v881 = vsel %vm379, %v864, 0
      %v884 = vsel %vm379, %v865, 0
      %v887 = vsel %vm379, %v866, 0
      %v890 = vsel %vm379, %v867, 0
      %v893 = vsel %vm379, %v868, 0
      %v896 = vsel %vm404, %v870, 0
      %898 = vmatpush.msra.mxu0 0.0
      %899 = vmatpush.msra.mxu0 0.0
      %900 = vmatpush.msra.mxu0 0.0
      %901 = vmatpush.msra.mxu0 0.0
      %902 = vmatpush.msra.mxu0 0.0
      %903 = vmatpush.msra.mxu0 0.0
      %904 = vmatpush.msra.mxu0 0.0
      %905 = vmatpush.msra.mxu0 0.0
      %906 = vmatpush.msra.mxu0 0.0
      %907 = vmatpush.msra.mxu0 0.0
      %908 = vmatpush.msra.mxu0 0.0
      %909 = vmatpush.msra.mxu0 0.0
      %910 = vmatpush.msra.mxu0 0.0
      %911 = vmatpush.msra.mxu0 0.0
      %912 = vmatpush.msra.mxu0 0.0
      %913 = vmatpush.msra.mxu0 %v896
      %914 = vmatmul.f32.gmra.mxu0 %v872
      %v915 = vpop.f32.mrf.mxu0
      %v916 = vadd.f32 0.0, %v915
      %917 = vmatmul.f32.gmra.mxu0 %v875
      %v918 = vpop.f32.mrf.mxu0
      %v919 = vadd.f32 0.0, %v918
      %920 = vmatmul.f32.gmra.mxu0 %v878
      %v921 = vpop.f32.mrf.mxu0
      %v922 = vadd.f32 0.0, %v921
      %923 = vmatmul.f32.gmra.mxu0 %v881
      %v924 = vpop.f32.mrf.mxu0
      %v925 = vadd.f32 0.0, %v924
      %926 = vmatmul.f32.gmra.mxu0 %v884
      %v927 = vpop.f32.mrf.mxu0
      %v928 = vadd.f32 0.0, %v927
      %929 = vmatmul.f32.gmra.mxu0 %v887
      %v930 = vpop.f32.mrf.mxu0
      %v931 = vadd.f32 0.0, %v930
      %932 = vmatmul.f32.gmra.mxu0 %v890
      %v933 = vpop.f32.mrf.mxu0
      %v934 = vadd.f32 0.0, %v933
      %935 = vmatmul.f32.gmra.mxu0 %v893
      %v936 = vpop.f32.mrf.mxu0
      %v937 = vadd.f32 0.0, %v936
      %938 = vdwg.mxu0
      %v939 = vadd.f32 %v853, %v916
      %v940 = vadd.f32 %v854, %v919
      %v941 = vadd.f32 %v855, %v922
      %v942 = vadd.f32 %v856, %v925
      %v943 = vadd.f32 %v857, %v928
      %v944 = vadd.f32 %v858, %v931
      %v945 = vadd.f32 %v859, %v934
      %v946 = vadd.f32 %v860, %v937
      %v947 = vld [vmem:[%s341 + $0x1] sm:$0xff]
      %v948 = vld [vmem:[%s341 + $0x11] sm:$0xff]
      %v949 = vld [vmem:[%s341 + $0x21] sm:$0xff]
      %v950 = vld [vmem:[%s341 + $0x31] sm:$0xff]
      %v951 = vld [vmem:[%s341 + $0x41] sm:$0xff]
      %v952 = vld [vmem:[%s341 + $0x51] sm:$0xff]
      %v953 = vld [vmem:[%s341 + $0x61] sm:$0xff]
      %v954 = vld [vmem:[%s341 + $0x71] sm:$0xff]
      %s955 = scalar_lea.vmem %s4, 28
      %v956 = vld [vmem:[%s955] sm:$0xf]
      %v958 = vsel %vm379, %v947, 0
      %v961 = vsel %vm379, %v948, 0
      %v964 = vsel %vm379, %v949, 0
      %v967 = vsel %vm379, %v950, 0
      %v970 = vsel %vm379, %v951, 0
      %v973 = vsel %vm379, %v952, 0
      %v976 = vsel %vm379, %v953, 0
      %v979 = vsel %vm379, %v954, 0
      %v982 = vsel %vm404, %v956, 0
      %984 = vmatpush.msra.mxu0 0.0
      %985 = vmatpush.msra.mxu0 0.0
      %986 = vmatpush.msra.mxu0 0.0
      %987 = vmatpush.msra.mxu0 0.0
      %988 = vmatpush.msra.mxu0 0.0
      %989 = vmatpush.msra.mxu0 0.0
      %990 = vmatpush.msra.mxu0 0.0
      %991 = vmatpush.msra.mxu0 0.0
      %992 = vmatpush.msra.mxu0 0.0
      %993 = vmatpush.msra.mxu0 0.0
      %994 = vmatpush.msra.mxu0 0.0
      %995 = vmatpush.msra.mxu0 0.0
      %996 = vmatpush.msra.mxu0 0.0
      %997 = vmatpush.msra.mxu0 0.0
      %998 = vmatpush.msra.mxu0 0.0
      %999 = vmatpush.msra.mxu0 %v982
      %1000 = vmatmul.f32.gmra.mxu0 %v958
      %v1001 = vpop.f32.mrf.mxu0
      %v1002 = vadd.f32 0.0, %v1001
      %1003 = vmatmul.f32.gmra.mxu0 %v961
      %v1004 = vpop.f32.mrf.mxu0
      %v1005 = vadd.f32 0.0, %v1004
      %1006 = vmatmul.f32.gmra.mxu0 %v964
      %v1007 = vpop.f32.mrf.mxu0
      %v1008 = vadd.f32 0.0, %v1007
      %1009 = vmatmul.f32.gmra.mxu0 %v967
      %v1010 = vpop.f32.mrf.mxu0
      %v1011 = vadd.f32 0.0, %v1010
      %1012 = vmatmul.f32.gmra.mxu0 %v970
      %v1013 = vpop.f32.mrf.mxu0
      %v1014 = vadd.f32 0.0, %v1013
      %1015 = vmatmul.f32.gmra.mxu0 %v973
      %v1016 = vpop.f32.mrf.mxu0
      %v1017 = vadd.f32 0.0, %v1016
      %1018 = vmatmul.f32.gmra.mxu0 %v976
      %v1019 = vpop.f32.mrf.mxu0
      %v1020 = vadd.f32 0.0, %v1019
      %1021 = vmatmul.f32.gmra.mxu0 %v979
      %v1022 = vpop.f32.mrf.mxu0
      %v1023 = vadd.f32 0.0, %v1022
      %1024 = vdwg.mxu0
      %v1025 = vadd.f32 %v939, %v1002
      %v1026 = vadd.f32 %v940, %v1005
      %v1027 = vadd.f32 %v941, %v1008
      %v1028 = vadd.f32 %v942, %v1011
      %v1029 = vadd.f32 %v943, %v1014
      %v1030 = vadd.f32 %v944, %v1017
      %v1031 = vadd.f32 %v945, %v1020
      %v1032 = vadd.f32 %v946, %v1023
      %v1033 = vld [vmem:[%s346 + $0x1] sm:$0xff]
      %v1034 = vld [vmem:[%s346 + $0x11] sm:$0xff]
      %v1035 = vld [vmem:[%s346 + $0x21] sm:$0xff]
      %v1036 = vld [vmem:[%s346 + $0x31] sm:$0xff]
      %v1037 = vld [vmem:[%s346 + $0x41] sm:$0xff]
      %v1038 = vld [vmem:[%s346 + $0x51] sm:$0xff]
      %v1039 = vld [vmem:[%s346 + $0x61] sm:$0xff]
      %v1040 = vld [vmem:[%s346 + $0x71] sm:$0xff]
      %s1041 = scalar_lea.vmem %s4, 32
      %v1042 = vld [vmem:[%s1041] sm:$0xf]
      %v1044 = vsel %vm379, %v1033, 0
      %v1047 = vsel %vm379, %v1034, 0
      %v1050 = vsel %vm379, %v1035, 0
      %v1053 = vsel %vm379, %v1036, 0
      %v1056 = vsel %vm379, %v1037, 0
      %v1059 = vsel %vm379, %v1038, 0
      %v1062 = vsel %vm379, %v1039, 0
      %v1065 = vsel %vm379, %v1040, 0
      %v1068 = vsel %vm404, %v1042, 0
      %1070 = vmatpush.msra.mxu0 0.0
      %1071 = vmatpush.msra.mxu0 0.0
      %1072 = vmatpush.msra.mxu0 0.0
      %1073 = vmatpush.msra.mxu0 0.0
      %1074 = vmatpush.msra.mxu0 0.0
      %1075 = vmatpush.msra.mxu0 0.0
      %1076 = vmatpush.msra.mxu0 0.0
      %1077 = vmatpush.msra.mxu0 0.0
      %1078 = vmatpush.msra.mxu0 0.0
      %1079 = vmatpush.msra.mxu0 0.0
      %1080 = vmatpush.msra.mxu0 0.0
      %1081 = vmatpush.msra.mxu0 0.0
      %1082 = vmatpush.msra.mxu0 0.0
      %1083 = vmatpush.msra.mxu0 0.0
      %1084 = vmatpush.msra.mxu0 0.0
      %1085 = vmatpush.msra.mxu0 %v1068
      %1086 = vmatmul.f32.gmra.mxu0 %v1044
      %v1087 = vpop.f32.mrf.mxu0
      %v1088 = vadd.f32 0.0, %v1087
      %1089 = vmatmul.f32.gmra.mxu0 %v1047
      %v1090 = vpop.f32.mrf.mxu0
      %v1091 = vadd.f32 0.0, %v1090
      %1092 = vmatmul.f32.gmra.mxu0 %v1050
      %v1093 = vpop.f32.mrf.mxu0
      %v1094 = vadd.f32 0.0, %v1093
      %1095 = vmatmul.f32.gmra.mxu0 %v1053
      %v1096 = vpop.f32.mrf.mxu0
      %v1097 = vadd.f32 0.0, %v1096
      %1098 = vmatmul.f32.gmra.mxu0 %v1056
      %v1099 = vpop.f32.mrf.mxu0
      %v1100 = vadd.f32 0.0, %v1099
      %1101 = vmatmul.f32.gmra.mxu0 %v1059
      %v1102 = vpop.f32.mrf.mxu0
      %v1103 = vadd.f32 0.0, %v1102
      %1104 = vmatmul.f32.gmra.mxu0 %v1062
      %v1105 = vpop.f32.mrf.mxu0
      %v1106 = vadd.f32 0.0, %v1105
      %1107 = vmatmul.f32.gmra.mxu0 %v1065
      %v1108 = vpop.f32.mrf.mxu0
      %v1109 = vadd.f32 0.0, %v1108
      %1110 = vdwg.mxu0
      %v1111 = vadd.f32 %v1025, %v1088
      %v1112 = vadd.f32 %v1026, %v1091
      %v1113 = vadd.f32 %v1027, %v1094
      %v1114 = vadd.f32 %v1028, %v1097
      %v1115 = vadd.f32 %v1029, %v1100
      %v1116 = vadd.f32 %v1030, %v1103
      %v1117 = vadd.f32 %v1031, %v1106
      %v1118 = vadd.f32 %v1032, %v1109
      %v1119 = vld [vmem:[%s341 + $0x2] sm:$0xff]
      %v1120 = vld [vmem:[%s341 + $0x12] sm:$0xff]
      %v1121 = vld [vmem:[%s341 + $0x22] sm:$0xff]
      %v1122 = vld [vmem:[%s341 + $0x32] sm:$0xff]
      %v1123 = vld [vmem:[%s341 + $0x42] sm:$0xff]
      %v1124 = vld [vmem:[%s341 + $0x52] sm:$0xff]
      %v1125 = vld [vmem:[%s341 + $0x62] sm:$0xff]
      %v1126 = vld [vmem:[%s341 + $0x72] sm:$0xff]
      %s1127 = scalar_lea.vmem %s4, 36
      %v1128 = vld [vmem:[%s1127] sm:$0xf]
      %v1130 = vsel %vm379, %v1119, 0
      %v1133 = vsel %vm379, %v1120, 0
      %v1136 = vsel %vm379, %v1121, 0
      %v1139 = vsel %vm379, %v1122, 0
      %v1142 = vsel %vm379, %v1123, 0
      %v1145 = vsel %vm379, %v1124, 0
      %v1148 = vsel %vm379, %v1125, 0
      %v1151 = vsel %vm379, %v1126, 0
      %v1154 = vsel %vm404, %v1128, 0
      %1156 = vmatpush.msra.mxu0 0.0
      %1157 = vmatpush.msra.mxu0 0.0
      %1158 = vmatpush.msra.mxu0 0.0
      %1159 = vmatpush.msra.mxu0 0.0
      %1160 = vmatpush.msra.mxu0 0.0
      %1161 = vmatpush.msra.mxu0 0.0
      %1162 = vmatpush.msra.mxu0 0.0
      %1163 = vmatpush.msra.mxu0 0.0
      %1164 = vmatpush.msra.mxu0 0.0
      %1165 = vmatpush.msra.mxu0 0.0
      %1166 = vmatpush.msra.mxu0 0.0
      %1167 = vmatpush.msra.mxu0 0.0
      %1168 = vmatpush.msra.mxu0 0.0
      %1169 = vmatpush.msra.mxu0 0.0
      %1170 = vmatpush.msra.mxu0 0.0
      %1171 = vmatpush.msra.mxu0 %v1154
      %1172 = vmatmul.f32.gmra.mxu0 %v1130
      %v1173 = vpop.f32.mrf.mxu0
      %v1174 = vadd.f32 0.0, %v1173
      %1175 = vmatmul.f32.gmra.mxu0 %v1133
      %v1176 = vpop.f32.mrf.mxu0
      %v1177 = vadd.f32 0.0, %v1176
      %1178 = vmatmul.f32.gmra.mxu0 %v1136
      %v1179 = vpop.f32.mrf.mxu0
      %v1180 = vadd.f32 0.0, %v1179
      %1181 = vmatmul.f32.gmra.mxu0 %v1139
      %v1182 = vpop.f32.mrf.mxu0
      %v1183 = vadd.f32 0.0, %v1182
      %1184 = vmatmul.f32.gmra.mxu0 %v1142
      %v1185 = vpop.f32.mrf.mxu0
      %v1186 = vadd.f32 0.0, %v1185
      %1187 = vmatmul.f32.gmra.mxu0 %v1145
      %v1188 = vpop.f32.mrf.mxu0
      %v1189 = vadd.f32 0.0, %v1188
      %1190 = vmatmul.f32.gmra.mxu0 %v1148
      %v1191 = vpop.f32.mrf.mxu0
      %v1192 = vadd.f32 0.0, %v1191
      %1193 = vmatmul.f32.gmra.mxu0 %v1151
      %v1194 = vpop.f32.mrf.mxu0
      %v1195 = vadd.f32 0.0, %v1194
      %1196 = vdwg.mxu0
      %v1197 = vadd.f32 %v1111, %v1174
      %v1198 = vadd.f32 %v1112, %v1177
      %v1199 = vadd.f32 %v1113, %v1180
      %v1200 = vadd.f32 %v1114, %v1183
      %v1201 = vadd.f32 %v1115, %v1186
      %v1202 = vadd.f32 %v1116, %v1189
      %v1203 = vadd.f32 %v1117, %v1192
      %v1204 = vadd.f32 %v1118, %v1195
      %s1205 = scalar_lea.vmem %s331, 16
      %v1206 = vld [vmem:[%s1205] sm:$0xff]
      %v1207 = vld [vmem:[%s1205 + $0x10] sm:$0xff]
      %v1208 = vld [vmem:[%s1205 + $0x20] sm:$0xff]
      %v1209 = vld [vmem:[%s1205 + $0x30] sm:$0xff]
      %v1210 = vld [vmem:[%s1205 + $0x40] sm:$0xff]
      %v1211 = vld [vmem:[%s1205 + $0x50] sm:$0xff]
      %v1212 = vld [vmem:[%s1205 + $0x60] sm:$0xff]
      %v1213 = vld [vmem:[%s1205 + $0x70] sm:$0xff]
      %s1214 = scalar_lea.vmem %s4, 40
      %v1215 = vld [vmem:[%s1214] sm:$0xf]
      %v1217 = vsel %vm379, %v1206, 0
      %v1220 = vsel %vm379, %v1207, 0
      %v1223 = vsel %vm379, %v1208, 0
      %v1226 = vsel %vm379, %v1209, 0
      %v1229 = vsel %vm379, %v1210, 0
      %v1232 = vsel %vm379, %v1211, 0
      %v1235 = vsel %vm379, %v1212, 0
      %v1238 = vsel %vm379, %v1213, 0
      %v1241 = vsel %vm404, %v1215, 0
      %1243 = vmatpush.msra.mxu0 0.0
      %1244 = vmatpush.msra.mxu0 0.0
      %1245 = vmatpush.msra.mxu0 0.0
      %1246 = vmatpush.msra.mxu0 0.0
      %1247 = vmatpush.msra.mxu0 0.0
      %1248 = vmatpush.msra.mxu0 0.0
      %1249 = vmatpush.msra.mxu0 0.0
      %1250 = vmatpush.msra.mxu0 0.0
      %1251 = vmatpush.msra.mxu0 0.0
      %1252 = vmatpush.msra.mxu0 0.0
      %1253 = vmatpush.msra.mxu0 0.0
      %1254 = vmatpush.msra.mxu0 0.0
      %1255 = vmatpush.msra.mxu0 0.0
      %1256 = vmatpush.msra.mxu0 0.0
      %1257 = vmatpush.msra.mxu0 0.0
      %1258 = vmatpush.msra.mxu0 %v1241
      %1259 = vmatmul.f32.gmra.mxu0 %v1217
      %v1260 = vpop.f32.mrf.mxu0
      %v1261 = vadd.f32 0.0, %v1260
      %1262 = vmatmul.f32.gmra.mxu0 %v1220
      %v1263 = vpop.f32.mrf.mxu0
      %v1264 = vadd.f32 0.0, %v1263
      %1265 = vmatmul.f32.gmra.mxu0 %v1223
      %v1266 = vpop.f32.mrf.mxu0
      %v1267 = vadd.f32 0.0, %v1266
      %1268 = vmatmul.f32.gmra.mxu0 %v1226
      %v1269 = vpop.f32.mrf.mxu0
      %v1270 = vadd.f32 0.0, %v1269
      %1271 = vmatmul.f32.gmra.mxu0 %v1229
      %v1272 = vpop.f32.mrf.mxu0
      %v1273 = vadd.f32 0.0, %v1272
      %1274 = vmatmul.f32.gmra.mxu0 %v1232
      %v1275 = vpop.f32.mrf.mxu0
      %v1276 = vadd.f32 0.0, %v1275
      %1277 = vmatmul.f32.gmra.mxu0 %v1235
      %v1278 = vpop.f32.mrf.mxu0
      %v1279 = vadd.f32 0.0, %v1278
      %1280 = vmatmul.f32.gmra.mxu0 %v1238
      %v1281 = vpop.f32.mrf.mxu0
      %v1282 = vadd.f32 0.0, %v1281
      %1283 = vdwg.mxu0
      %v1284 = vadd.f32 %v1197, %v1261
      %v1285 = vadd.f32 %v1198, %v1264
      %v1286 = vadd.f32 %v1199, %v1267
      %v1287 = vadd.f32 %v1200, %v1270
      %v1288 = vadd.f32 %v1201, %v1273
      %v1289 = vadd.f32 %v1202, %v1276
      %v1290 = vadd.f32 %v1203, %v1279
      %v1291 = vadd.f32 %v1204, %v1282
      %s1292 = scalar_lea.vmem %s336, 16
      %v1293 = vld [vmem:[%s1292] sm:$0xff]
      %v1294 = vld [vmem:[%s1292 + $0x10] sm:$0xff]
      %v1295 = vld [vmem:[%s1292 + $0x20] sm:$0xff]
      %v1296 = vld [vmem:[%s1292 + $0x30] sm:$0xff]
      %v1297 = vld [vmem:[%s1292 + $0x40] sm:$0xff]
      %v1298 = vld [vmem:[%s1292 + $0x50] sm:$0xff]
      %v1299 = vld [vmem:[%s1292 + $0x60] sm:$0xff]
      %v1300 = vld [vmem:[%s1292 + $0x70] sm:$0xff]
      %s1301 = scalar_lea.vmem %s4, 44
      %v1302 = vld [vmem:[%s1301] sm:$0xf]
      %v1304 = vsel %vm379, %v1293, 0
      %v1307 = vsel %vm379, %v1294, 0
      %v1310 = vsel %vm379, %v1295, 0
      %v1313 = vsel %vm379, %v1296, 0
      %v1316 = vsel %vm379, %v1297, 0
      %v1319 = vsel %vm379, %v1298, 0
      %v1322 = vsel %vm379, %v1299, 0
      %v1325 = vsel %vm379, %v1300, 0
      %v1328 = vsel %vm404, %v1302, 0
      %1330 = vmatpush.msra.mxu0 0.0
      %1331 = vmatpush.msra.mxu0 0.0
      %1332 = vmatpush.msra.mxu0 0.0
      %1333 = vmatpush.msra.mxu0 0.0
      %1334 = vmatpush.msra.mxu0 0.0
      %1335 = vmatpush.msra.mxu0 0.0
      %1336 = vmatpush.msra.mxu0 0.0
      %1337 = vmatpush.msra.mxu0 0.0
      %1338 = vmatpush.msra.mxu0 0.0
      %1339 = vmatpush.msra.mxu0 0.0
      %1340 = vmatpush.msra.mxu0 0.0
      %1341 = vmatpush.msra.mxu0 0.0
      %1342 = vmatpush.msra.mxu0 0.0
      %1343 = vmatpush.msra.mxu0 0.0
      %1344 = vmatpush.msra.mxu0 0.0
      %1345 = vmatpush.msra.mxu0 %v1328
      %1346 = vmatmul.f32.gmra.mxu0 %v1304
      %v1347 = vpop.f32.mrf.mxu0
      %v1348 = vadd.f32 0.0, %v1347
      %1349 = vmatmul.f32.gmra.mxu0 %v1307
      %v1350 = vpop.f32.mrf.mxu0
      %v1351 = vadd.f32 0.0, %v1350
      %1352 = vmatmul.f32.gmra.mxu0 %v1310
      %v1353 = vpop.f32.mrf.mxu0
      %v1354 = vadd.f32 0.0, %v1353
      %1355 = vmatmul.f32.gmra.mxu0 %v1313
      %v1356 = vpop.f32.mrf.mxu0
      %v1357 = vadd.f32 0.0, %v1356
      %1358 = vmatmul.f32.gmra.mxu0 %v1316
      %v1359 = vpop.f32.mrf.mxu0
      %v1360 = vadd.f32 0.0, %v1359
      %1361 = vmatmul.f32.gmra.mxu0 %v1319
      %v1362 = vpop.f32.mrf.mxu0
      %v1363 = vadd.f32 0.0, %v1362
      %1364 = vmatmul.f32.gmra.mxu0 %v1322
      %v1365 = vpop.f32.mrf.mxu0
      %v1366 = vadd.f32 0.0, %v1365
      %1367 = vmatmul.f32.gmra.mxu0 %v1325
      %v1368 = vpop.f32.mrf.mxu0
      %v1369 = vadd.f32 0.0, %v1368
      %1370 = vdwg.mxu0
      %v1371 = vadd.f32 %v1284, %v1348
      %v1372 = vadd.f32 %v1285, %v1351
      %v1373 = vadd.f32 %v1286, %v1354
      %v1374 = vadd.f32 %v1287, %v1357
      %v1375 = vadd.f32 %v1288, %v1360
      %v1376 = vadd.f32 %v1289, %v1363
      %v1377 = vadd.f32 %v1290, %v1366
      %v1378 = vadd.f32 %v1291, %v1369
      %v1379 = vld [vmem:[%s1205 + $0x1] sm:$0xff]
      %v1380 = vld [vmem:[%s1205 + $0x11] sm:$0xff]
      %v1381 = vld [vmem:[%s1205 + $0x21] sm:$0xff]
      %v1382 = vld [vmem:[%s1205 + $0x31] sm:$0xff]
      %v1383 = vld [vmem:[%s1205 + $0x41] sm:$0xff]
      %v1384 = vld [vmem:[%s1205 + $0x51] sm:$0xff]
      %v1385 = vld [vmem:[%s1205 + $0x61] sm:$0xff]
      %v1386 = vld [vmem:[%s1205 + $0x71] sm:$0xff]
      %s1387 = scalar_lea.vmem %s4, 48
      %v1388 = vld [vmem:[%s1387] sm:$0xf]
      %v1390 = vsel %vm379, %v1379, 0
      %v1393 = vsel %vm379, %v1380, 0
      %v1396 = vsel %vm379, %v1381, 0
      %v1399 = vsel %vm379, %v1382, 0
      %v1402 = vsel %vm379, %v1383, 0
      %v1405 = vsel %vm379, %v1384, 0
      %v1408 = vsel %vm379, %v1385, 0
      %v1411 = vsel %vm379, %v1386, 0
      %v1414 = vsel %vm404, %v1388, 0
      %1416 = vmatpush.msra.mxu0 0.0
      %1417 = vmatpush.msra.mxu0 0.0
      %1418 = vmatpush.msra.mxu0 0.0
      %1419 = vmatpush.msra.mxu0 0.0
      %1420 = vmatpush.msra.mxu0 0.0
      %1421 = vmatpush.msra.mxu0 0.0
      %1422 = vmatpush.msra.mxu0 0.0
      %1423 = vmatpush.msra.mxu0 0.0
      %1424 = vmatpush.msra.mxu0 0.0
      %1425 = vmatpush.msra.mxu0 0.0
      %1426 = vmatpush.msra.mxu0 0.0
      %1427 = vmatpush.msra.mxu0 0.0
      %1428 = vmatpush.msra.mxu0 0.0
      %1429 = vmatpush.msra.mxu0 0.0
      %1430 = vmatpush.msra.mxu0 0.0
      %1431 = vmatpush.msra.mxu0 %v1414
      %1432 = vmatmul.f32.gmra.mxu0 %v1390
      %v1433 = vpop.f32.mrf.mxu0
      %v1434 = vadd.f32 0.0, %v1433
      %1435 = vmatmul.f32.gmra.mxu0 %v1393
      %v1436 = vpop.f32.mrf.mxu0
      %v1437 = vadd.f32 0.0, %v1436
      %1438 = vmatmul.f32.gmra.mxu0 %v1396
      %v1439 = vpop.f32.mrf.mxu0
      %v1440 = vadd.f32 0.0, %v1439
      %1441 = vmatmul.f32.gmra.mxu0 %v1399
      %v1442 = vpop.f32.mrf.mxu0
      %v1443 = vadd.f32 0.0, %v1442
      %1444 = vmatmul.f32.gmra.mxu0 %v1402
      %v1445 = vpop.f32.mrf.mxu0
      %v1446 = vadd.f32 0.0, %v1445
      %1447 = vmatmul.f32.gmra.mxu0 %v1405
      %v1448 = vpop.f32.mrf.mxu0
      %v1449 = vadd.f32 0.0, %v1448
      %1450 = vmatmul.f32.gmra.mxu0 %v1408
      %v1451 = vpop.f32.mrf.mxu0
      %v1452 = vadd.f32 0.0, %v1451
      %1453 = vmatmul.f32.gmra.mxu0 %v1411
      %v1454 = vpop.f32.mrf.mxu0
      %v1455 = vadd.f32 0.0, %v1454
      %1456 = vdwg.mxu0
      %v1457 = vadd.f32 %v1371, %v1434
      %v1458 = vadd.f32 %v1372, %v1437
      %v1459 = vadd.f32 %v1373, %v1440
      %v1460 = vadd.f32 %v1374, %v1443
      %v1461 = vadd.f32 %v1375, %v1446
      %v1462 = vadd.f32 %v1376, %v1449
      %v1463 = vadd.f32 %v1377, %v1452
      %v1464 = vadd.f32 %v1378, %v1455
      %v1465 = vld [vmem:[%s1292 + $0x1] sm:$0xff]
      %v1466 = vld [vmem:[%s1292 + $0x11] sm:$0xff]
      %v1467 = vld [vmem:[%s1292 + $0x21] sm:$0xff]
      %v1468 = vld [vmem:[%s1292 + $0x31] sm:$0xff]
      %v1469 = vld [vmem:[%s1292 + $0x41] sm:$0xff]
      %v1470 = vld [vmem:[%s1292 + $0x51] sm:$0xff]
      %v1471 = vld [vmem:[%s1292 + $0x61] sm:$0xff]
      %v1472 = vld [vmem:[%s1292 + $0x71] sm:$0xff]
      %s1473 = scalar_lea.vmem %s4, 52
      %v1474 = vld [vmem:[%s1473] sm:$0xf]
      %v1476 = vsel %vm379, %v1465, 0
      %v1479 = vsel %vm379, %v1466, 0
      %v1482 = vsel %vm379, %v1467, 0
      %v1485 = vsel %vm379, %v1468, 0
      %v1488 = vsel %vm379, %v1469, 0
      %v1491 = vsel %vm379, %v1470, 0
      %v1494 = vsel %vm379, %v1471, 0
      %v1497 = vsel %vm379, %v1472, 0
      %v1500 = vsel %vm404, %v1474, 0
      %1502 = vmatpush.msra.mxu0 0.0
      %1503 = vmatpush.msra.mxu0 0.0
      %1504 = vmatpush.msra.mxu0 0.0
      %1505 = vmatpush.msra.mxu0 0.0
      %1506 = vmatpush.msra.mxu0 0.0
      %1507 = vmatpush.msra.mxu0 0.0
      %1508 = vmatpush.msra.mxu0 0.0
      %1509 = vmatpush.msra.mxu0 0.0
      %1510 = vmatpush.msra.mxu0 0.0
      %1511 = vmatpush.msra.mxu0 0.0
      %1512 = vmatpush.msra.mxu0 0.0
      %1513 = vmatpush.msra.mxu0 0.0
      %1514 = vmatpush.msra.mxu0 0.0
      %1515 = vmatpush.msra.mxu0 0.0
      %1516 = vmatpush.msra.mxu0 0.0
      %1517 = vmatpush.msra.mxu0 %v1500
      %1518 = vmatmul.f32.gmra.mxu0 %v1476
      %v1519 = vpop.f32.mrf.mxu0
      %v1520 = vadd.f32 0.0, %v1519
      %1521 = vmatmul.f32.gmra.mxu0 %v1479
      %v1522 = vpop.f32.mrf.mxu0
      %v1523 = vadd.f32 0.0, %v1522
      %1524 = vmatmul.f32.gmra.mxu0 %v1482
      %v1525 = vpop.f32.mrf.mxu0
      %v1526 = vadd.f32 0.0, %v1525
      %1527 = vmatmul.f32.gmra.mxu0 %v1485
      %v1528 = vpop.f32.mrf.mxu0
      %v1529 = vadd.f32 0.0, %v1528
      %1530 = vmatmul.f32.gmra.mxu0 %v1488
      %v1531 = vpop.f32.mrf.mxu0
      %v1532 = vadd.f32 0.0, %v1531
      %1533 = vmatmul.f32.gmra.mxu0 %v1491
      %v1534 = vpop.f32.mrf.mxu0
      %v1535 = vadd.f32 0.0, %v1534
      %1536 = vmatmul.f32.gmra.mxu0 %v1494
      %v1537 = vpop.f32.mrf.mxu0
      %v1538 = vadd.f32 0.0, %v1537
      %1539 = vmatmul.f32.gmra.mxu0 %v1497
      %v1540 = vpop.f32.mrf.mxu0
      %v1541 = vadd.f32 0.0, %v1540
      %1542 = vdwg.mxu0
      %v1543 = vadd.f32 %v1457, %v1520
      %v1544 = vadd.f32 %v1458, %v1523
      %v1545 = vadd.f32 %v1459, %v1526
      %v1546 = vadd.f32 %v1460, %v1529
      %v1547 = vadd.f32 %v1461, %v1532
      %v1548 = vadd.f32 %v1462, %v1535
      %v1549 = vadd.f32 %v1463, %v1538
      %v1550 = vadd.f32 %v1464, %v1541
      %v1551 = vld [vmem:[%s1205 + $0x2] sm:$0xff]
      %v1552 = vld [vmem:[%s1205 + $0x12] sm:$0xff]
      %v1553 = vld [vmem:[%s1205 + $0x22] sm:$0xff]
      %v1554 = vld [vmem:[%s1205 + $0x32] sm:$0xff]
      %v1555 = vld [vmem:[%s1205 + $0x42] sm:$0xff]
      %v1556 = vld [vmem:[%s1205 + $0x52] sm:$0xff]
      %v1557 = vld [vmem:[%s1205 + $0x62] sm:$0xff]
      %v1558 = vld [vmem:[%s1205 + $0x72] sm:$0xff]
      %s1559 = scalar_lea.vmem %s4, 56
      %v1560 = vld [vmem:[%s1559] sm:$0xf]
      %v1562 = vsel %vm379, %v1551, 0
      %v1565 = vsel %vm379, %v1552, 0
      %v1568 = vsel %vm379, %v1553, 0
      %v1571 = vsel %vm379, %v1554, 0
      %v1574 = vsel %vm379, %v1555, 0
      %v1577 = vsel %vm379, %v1556, 0
      %v1580 = vsel %vm379, %v1557, 0
      %v1583 = vsel %vm379, %v1558, 0
      %v1586 = vsel %vm404, %v1560, 0
      %1588 = vmatpush.msra.mxu0 0.0
      %1589 = vmatpush.msra.mxu0 0.0
      %1590 = vmatpush.msra.mxu0 0.0
      %1591 = vmatpush.msra.mxu0 0.0
      %1592 = vmatpush.msra.mxu0 0.0
      %1593 = vmatpush.msra.mxu0 0.0
      %1594 = vmatpush.msra.mxu0 0.0
      %1595 = vmatpush.msra.mxu0 0.0
      %1596 = vmatpush.msra.mxu0 0.0
      %1597 = vmatpush.msra.mxu0 0.0
      %1598 = vmatpush.msra.mxu0 0.0
      %1599 = vmatpush.msra.mxu0 0.0
      %1600 = vmatpush.msra.mxu0 0.0
      %1601 = vmatpush.msra.mxu0 0.0
      %1602 = vmatpush.msra.mxu0 0.0
      %1603 = vmatpush.msra.mxu0 %v1586
      %1604 = vmatmul.f32.gmra.mxu0 %v1562
      %v1605 = vpop.f32.mrf.mxu0
      %v1606 = vadd.f32 0.0, %v1605
      %1607 = vmatmul.f32.gmra.mxu0 %v1565
      %v1608 = vpop.f32.mrf.mxu0
      %v1609 = vadd.f32 0.0, %v1608
      %1610 = vmatmul.f32.gmra.mxu0 %v1568
      %v1611 = vpop.f32.mrf.mxu0
      %v1612 = vadd.f32 0.0, %v1611
      %1613 = vmatmul.f32.gmra.mxu0 %v1571
      %v1614 = vpop.f32.mrf.mxu0
      %v1615 = vadd.f32 0.0, %v1614
      %1616 = vmatmul.f32.gmra.mxu0 %v1574
      %v1617 = vpop.f32.mrf.mxu0
      %v1618 = vadd.f32 0.0, %v1617
      %1619 = vmatmul.f32.gmra.mxu0 %v1577
      %v1620 = vpop.f32.mrf.mxu0
      %v1621 = vadd.f32 0.0, %v1620
      %1622 = vmatmul.f32.gmra.mxu0 %v1580
      %v1623 = vpop.f32.mrf.mxu0
      %v1624 = vadd.f32 0.0, %v1623
      %1625 = vmatmul.f32.gmra.mxu0 %v1583
      %v1626 = vpop.f32.mrf.mxu0
      %v1627 = vadd.f32 0.0, %v1626
      %1628 = vdwg.mxu0
      %v1629 = vadd.f32 %v1543, %v1606
      %v1630 = vadd.f32 %v1544, %v1609
      %v1631 = vadd.f32 %v1545, %v1612
      %v1632 = vadd.f32 %v1546, %v1615
      %v1633 = vadd.f32 %v1547, %v1618
      %v1634 = vadd.f32 %v1548, %v1621
      %v1635 = vadd.f32 %v1549, %v1624
      %v1636 = vadd.f32 %v1550, %v1627
      %s1637 = scalar_lea.vmem %s341, 16
      %v1638 = vld [vmem:[%s1637] sm:$0xff]
      %v1639 = vld [vmem:[%s1637 + $0x10] sm:$0xff]
      %v1640 = vld [vmem:[%s1637 + $0x20] sm:$0xff]
      %v1641 = vld [vmem:[%s1637 + $0x30] sm:$0xff]
      %v1642 = vld [vmem:[%s1637 + $0x40] sm:$0xff]
      %v1643 = vld [vmem:[%s1637 + $0x50] sm:$0xff]
      %v1644 = vld [vmem:[%s1637 + $0x60] sm:$0xff]
      %v1645 = vld [vmem:[%s1637 + $0x70] sm:$0xff]
      %s1646 = scalar_lea.vmem %s4, 60
      %v1647 = vld [vmem:[%s1646] sm:$0xf]
      %v1649 = vsel %vm379, %v1638, 0
      %v1652 = vsel %vm379, %v1639, 0
      %v1655 = vsel %vm379, %v1640, 0
      %v1658 = vsel %vm379, %v1641, 0
      %v1661 = vsel %vm379, %v1642, 0
      %v1664 = vsel %vm379, %v1643, 0
      %v1667 = vsel %vm379, %v1644, 0
      %v1670 = vsel %vm379, %v1645, 0
      %v1673 = vsel %vm404, %v1647, 0
      %1675 = vmatpush.msra.mxu0 0.0
      %1676 = vmatpush.msra.mxu0 0.0
      %1677 = vmatpush.msra.mxu0 0.0
      %1678 = vmatpush.msra.mxu0 0.0
      %1679 = vmatpush.msra.mxu0 0.0
      %1680 = vmatpush.msra.mxu0 0.0
      %1681 = vmatpush.msra.mxu0 0.0
      %1682 = vmatpush.msra.mxu0 0.0
      %1683 = vmatpush.msra.mxu0 0.0
      %1684 = vmatpush.msra.mxu0 0.0
      %1685 = vmatpush.msra.mxu0 0.0
      %1686 = vmatpush.msra.mxu0 0.0
      %1687 = vmatpush.msra.mxu0 0.0
      %1688 = vmatpush.msra.mxu0 0.0
      %1689 = vmatpush.msra.mxu0 0.0
      %1690 = vmatpush.msra.mxu0 %v1673
      %1691 = vmatmul.f32.gmra.mxu0 %v1649
      %v1692 = vpop.f32.mrf.mxu0
      %v1693 = vadd.f32 0.0, %v1692
      %1694 = vmatmul.f32.gmra.mxu0 %v1652
      %v1695 = vpop.f32.mrf.mxu0
      %v1696 = vadd.f32 0.0, %v1695
      %1697 = vmatmul.f32.gmra.mxu0 %v1655
      %v1698 = vpop.f32.mrf.mxu0
      %v1699 = vadd.f32 0.0, %v1698
      %1700 = vmatmul.f32.gmra.mxu0 %v1658
      %v1701 = vpop.f32.mrf.mxu0
      %v1702 = vadd.f32 0.0, %v1701
      %1703 = vmatmul.f32.gmra.mxu0 %v1661
      %v1704 = vpop.f32.mrf.mxu0
      %v1705 = vadd.f32 0.0, %v1704
      %1706 = vmatmul.f32.gmra.mxu0 %v1664
      %v1707 = vpop.f32.mrf.mxu0
      %v1708 = vadd.f32 0.0, %v1707
      %1709 = vmatmul.f32.gmra.mxu0 %v1667
      %v1710 = vpop.f32.mrf.mxu0
      %v1711 = vadd.f32 0.0, %v1710
      %1712 = vmatmul.f32.gmra.mxu0 %v1670
      %v1713 = vpop.f32.mrf.mxu0
      %v1714 = vadd.f32 0.0, %v1713
      %1715 = vdwg.mxu0
      %v1716 = vadd.f32 %v1629, %v1693
      %v1717 = vadd.f32 %v1630, %v1696
      %v1718 = vadd.f32 %v1631, %v1699
      %v1719 = vadd.f32 %v1632, %v1702
      %v1720 = vadd.f32 %v1633, %v1705
      %v1721 = vadd.f32 %v1634, %v1708
      %v1722 = vadd.f32 %v1635, %v1711
      %v1723 = vadd.f32 %v1636, %v1714
      %s1724 = scalar_lea.vmem %s346, 16
      %v1725 = vld [vmem:[%s1724] sm:$0xff]
      %v1726 = vld [vmem:[%s1724 + $0x10] sm:$0xff]
      %v1727 = vld [vmem:[%s1724 + $0x20] sm:$0xff]
      %v1728 = vld [vmem:[%s1724 + $0x30] sm:$0xff]
      %v1729 = vld [vmem:[%s1724 + $0x40] sm:$0xff]
      %v1730 = vld [vmem:[%s1724 + $0x50] sm:$0xff]
      %v1731 = vld [vmem:[%s1724 + $0x60] sm:$0xff]
      %v1732 = vld [vmem:[%s1724 + $0x70] sm:$0xff]
      %s1733 = scalar_lea.vmem %s4, 64
      %v1734 = vld [vmem:[%s1733] sm:$0xf]
      %v1736 = vsel %vm379, %v1725, 0
      %v1739 = vsel %vm379, %v1726, 0
      %v1742 = vsel %vm379, %v1727, 0
      %v1745 = vsel %vm379, %v1728, 0
      %v1748 = vsel %vm379, %v1729, 0
      %v1751 = vsel %vm379, %v1730, 0
      %v1754 = vsel %vm379, %v1731, 0
      %v1757 = vsel %vm379, %v1732, 0
      %v1760 = vsel %vm404, %v1734, 0
      %1762 = vmatpush.msra.mxu0 0.0
      %1763 = vmatpush.msra.mxu0 0.0
      %1764 = vmatpush.msra.mxu0 0.0
      %1765 = vmatpush.msra.mxu0 0.0
      %1766 = vmatpush.msra.mxu0 0.0
      %1767 = vmatpush.msra.mxu0 0.0
      %1768 = vmatpush.msra.mxu0 0.0
      %1769 = vmatpush.msra.mxu0 0.0
      %1770 = vmatpush.msra.mxu0 0.0
      %1771 = vmatpush.msra.mxu0 0.0
      %1772 = vmatpush.msra.mxu0 0.0
      %1773 = vmatpush.msra.mxu0 0.0
      %1774 = vmatpush.msra.mxu0 0.0
      %1775 = vmatpush.msra.mxu0 0.0
      %1776 = vmatpush.msra.mxu0 0.0
      %1777 = vmatpush.msra.mxu0 %v1760
      %1778 = vmatmul.f32.gmra.mxu0 %v1736
      %v1779 = vpop.f32.mrf.mxu0
      %v1780 = vadd.f32 0.0, %v1779
      %1781 = vmatmul.f32.gmra.mxu0 %v1739
      %v1782 = vpop.f32.mrf.mxu0
      %v1783 = vadd.f32 0.0, %v1782
      %1784 = vmatmul.f32.gmra.mxu0 %v1742
      %v1785 = vpop.f32.mrf.mxu0
      %v1786 = vadd.f32 0.0, %v1785
      %1787 = vmatmul.f32.gmra.mxu0 %v1745
      %v1788 = vpop.f32.mrf.mxu0
      %v1789 = vadd.f32 0.0, %v1788
      %1790 = vmatmul.f32.gmra.mxu0 %v1748
      %v1791 = vpop.f32.mrf.mxu0
      %v1792 = vadd.f32 0.0, %v1791
      %1793 = vmatmul.f32.gmra.mxu0 %v1751
      %v1794 = vpop.f32.mrf.mxu0
      %v1795 = vadd.f32 0.0, %v1794
      %1796 = vmatmul.f32.gmra.mxu0 %v1754
      %v1797 = vpop.f32.mrf.mxu0
      %v1798 = vadd.f32 0.0, %v1797
      %1799 = vmatmul.f32.gmra.mxu0 %v1757
      %v1800 = vpop.f32.mrf.mxu0
      %v1801 = vadd.f32 0.0, %v1800
      %1802 = vdwg.mxu0
      %v1803 = vadd.f32 %v1716, %v1780
      %v1804 = vadd.f32 %v1717, %v1783
      %v1805 = vadd.f32 %v1718, %v1786
      %v1806 = vadd.f32 %v1719, %v1789
      %v1807 = vadd.f32 %v1720, %v1792
      %v1808 = vadd.f32 %v1721, %v1795
      %v1809 = vadd.f32 %v1722, %v1798
      %v1810 = vadd.f32 %v1723, %v1801
      %v1811 = vld [vmem:[%s1637 + $0x1] sm:$0xff]
      %v1812 = vld [vmem:[%s1637 + $0x11] sm:$0xff]
      %v1813 = vld [vmem:[%s1637 + $0x21] sm:$0xff]
      %v1814 = vld [vmem:[%s1637 + $0x31] sm:$0xff]
      %v1815 = vld [vmem:[%s1637 + $0x41] sm:$0xff]
      %v1816 = vld [vmem:[%s1637 + $0x51] sm:$0xff]
      %v1817 = vld [vmem:[%s1637 + $0x61] sm:$0xff]
      %v1818 = vld [vmem:[%s1637 + $0x71] sm:$0xff]
      %s1819 = scalar_lea.vmem %s4, 68
      %v1820 = vld [vmem:[%s1819] sm:$0xf]
      %v1822 = vsel %vm379, %v1811, 0
      %v1825 = vsel %vm379, %v1812, 0
      %v1828 = vsel %vm379, %v1813, 0
      %v1831 = vsel %vm379, %v1814, 0
      %v1834 = vsel %vm379, %v1815, 0
      %v1837 = vsel %vm379, %v1816, 0
      %v1840 = vsel %vm379, %v1817, 0
      %v1843 = vsel %vm379, %v1818, 0
      %v1846 = vsel %vm404, %v1820, 0
      %1848 = vmatpush.msra.mxu0 0.0
      %1849 = vmatpush.msra.mxu0 0.0
      %1850 = vmatpush.msra.mxu0 0.0
      %1851 = vmatpush.msra.mxu0 0.0
      %1852 = vmatpush.msra.mxu0 0.0
      %1853 = vmatpush.msra.mxu0 0.0
      %1854 = vmatpush.msra.mxu0 0.0
      %1855 = vmatpush.msra.mxu0 0.0
      %1856 = vmatpush.msra.mxu0 0.0
      %1857 = vmatpush.msra.mxu0 0.0
      %1858 = vmatpush.msra.mxu0 0.0
      %1859 = vmatpush.msra.mxu0 0.0
      %1860 = vmatpush.msra.mxu0 0.0
      %1861 = vmatpush.msra.mxu0 0.0
      %1862 = vmatpush.msra.mxu0 0.0
      %1863 = vmatpush.msra.mxu0 %v1846
      %1864 = vmatmul.f32.gmra.mxu0 %v1822
      %v1865 = vpop.f32.mrf.mxu0
      %v1866 = vadd.f32 0.0, %v1865
      %1867 = vmatmul.f32.gmra.mxu0 %v1825
      %v1868 = vpop.f32.mrf.mxu0
      %v1869 = vadd.f32 0.0, %v1868
      %1870 = vmatmul.f32.gmra.mxu0 %v1828
      %v1871 = vpop.f32.mrf.mxu0
      %v1872 = vadd.f32 0.0, %v1871
      %1873 = vmatmul.f32.gmra.mxu0 %v1831
      %v1874 = vpop.f32.mrf.mxu0
      %v1875 = vadd.f32 0.0, %v1874
      %1876 = vmatmul.f32.gmra.mxu0 %v1834
      %v1877 = vpop.f32.mrf.mxu0
      %v1878 = vadd.f32 0.0, %v1877
      %1879 = vmatmul.f32.gmra.mxu0 %v1837
      %v1880 = vpop.f32.mrf.mxu0
      %v1881 = vadd.f32 0.0, %v1880
      %1882 = vmatmul.f32.gmra.mxu0 %v1840
      %v1883 = vpop.f32.mrf.mxu0
      %v1884 = vadd.f32 0.0, %v1883
      %1885 = vmatmul.f32.gmra.mxu0 %v1843
      %v1886 = vpop.f32.mrf.mxu0
      %v1887 = vadd.f32 0.0, %v1886
      %1888 = vdwg.mxu0
      %v1889 = vadd.f32 %v1803, %v1866
      %v1890 = vadd.f32 %v1804, %v1869
      %v1891 = vadd.f32 %v1805, %v1872
      %v1892 = vadd.f32 %v1806, %v1875
      %v1893 = vadd.f32 %v1807, %v1878
      %v1894 = vadd.f32 %v1808, %v1881
      %v1895 = vadd.f32 %v1809, %v1884
      %v1896 = vadd.f32 %v1810, %v1887
      %v1897 = vld [vmem:[%s1724 + $0x1] sm:$0xff]
      %v1898 = vld [vmem:[%s1724 + $0x11] sm:$0xff]
      %v1899 = vld [vmem:[%s1724 + $0x21] sm:$0xff]
      %v1900 = vld [vmem:[%s1724 + $0x31] sm:$0xff]
      %v1901 = vld [vmem:[%s1724 + $0x41] sm:$0xff]
      %v1902 = vld [vmem:[%s1724 + $0x51] sm:$0xff]
      %v1903 = vld [vmem:[%s1724 + $0x61] sm:$0xff]
      %v1904 = vld [vmem:[%s1724 + $0x71] sm:$0xff]
      %s1905 = scalar_lea.vmem %s4, 72
      %v1906 = vld [vmem:[%s1905] sm:$0xf]
      %v1908 = vsel %vm379, %v1897, 0
      %v1911 = vsel %vm379, %v1898, 0
      %v1914 = vsel %vm379, %v1899, 0
      %v1917 = vsel %vm379, %v1900, 0
      %v1920 = vsel %vm379, %v1901, 0
      %v1923 = vsel %vm379, %v1902, 0
      %v1926 = vsel %vm379, %v1903, 0
      %v1929 = vsel %vm379, %v1904, 0
      %v1932 = vsel %vm404, %v1906, 0
      %1934 = vmatpush.msra.mxu0 0.0
      %1935 = vmatpush.msra.mxu0 0.0
      %1936 = vmatpush.msra.mxu0 0.0
      %1937 = vmatpush.msra.mxu0 0.0
      %1938 = vmatpush.msra.mxu0 0.0
      %1939 = vmatpush.msra.mxu0 0.0
      %1940 = vmatpush.msra.mxu0 0.0
      %1941 = vmatpush.msra.mxu0 0.0
      %1942 = vmatpush.msra.mxu0 0.0
      %1943 = vmatpush.msra.mxu0 0.0
      %1944 = vmatpush.msra.mxu0 0.0
      %1945 = vmatpush.msra.mxu0 0.0
      %1946 = vmatpush.msra.mxu0 0.0
      %1947 = vmatpush.msra.mxu0 0.0
      %1948 = vmatpush.msra.mxu0 0.0
      %1949 = vmatpush.msra.mxu0 %v1932
      %1950 = vmatmul.f32.gmra.mxu0 %v1908
      %v1951 = vpop.f32.mrf.mxu0
      %v1952 = vadd.f32 0.0, %v1951
      %1953 = vmatmul.f32.gmra.mxu0 %v1911
      %v1954 = vpop.f32.mrf.mxu0
      %v1955 = vadd.f32 0.0, %v1954
      %1956 = vmatmul.f32.gmra.mxu0 %v1914
      %v1957 = vpop.f32.mrf.mxu0
      %v1958 = vadd.f32 0.0, %v1957
      %1959 = vmatmul.f32.gmra.mxu0 %v1917
      %v1960 = vpop.f32.mrf.mxu0
      %v1961 = vadd.f32 0.0, %v1960
      %1962 = vmatmul.f32.gmra.mxu0 %v1920
      %v1963 = vpop.f32.mrf.mxu0
      %v1964 = vadd.f32 0.0, %v1963
      %1965 = vmatmul.f32.gmra.mxu0 %v1923
      %v1966 = vpop.f32.mrf.mxu0
      %v1967 = vadd.f32 0.0, %v1966
      %1968 = vmatmul.f32.gmra.mxu0 %v1926
      %v1969 = vpop.f32.mrf.mxu0
      %v1970 = vadd.f32 0.0, %v1969
      %1971 = vmatmul.f32.gmra.mxu0 %v1929
      %v1972 = vpop.f32.mrf.mxu0
      %v1973 = vadd.f32 0.0, %v1972
      %1974 = vdwg.mxu0
      %v1975 = vadd.f32 %v1889, %v1952
      %v1976 = vadd.f32 %v1890, %v1955
      %v1977 = vadd.f32 %v1891, %v1958
      %v1978 = vadd.f32 %v1892, %v1961
      %v1979 = vadd.f32 %v1893, %v1964
      %v1980 = vadd.f32 %v1894, %v1967
      %v1981 = vadd.f32 %v1895, %v1970
      %v1982 = vadd.f32 %v1896, %v1973
      %v1983 = vld [vmem:[%s1637 + $0x2] sm:$0xff]
      %v1984 = vld [vmem:[%s1637 + $0x12] sm:$0xff]
      %v1985 = vld [vmem:[%s1637 + $0x22] sm:$0xff]
      %v1986 = vld [vmem:[%s1637 + $0x32] sm:$0xff]
      %v1987 = vld [vmem:[%s1637 + $0x42] sm:$0xff]
      %v1988 = vld [vmem:[%s1637 + $0x52] sm:$0xff]
      %v1989 = vld [vmem:[%s1637 + $0x62] sm:$0xff]
      %v1990 = vld [vmem:[%s1637 + $0x72] sm:$0xff]
      %s1991 = scalar_lea.vmem %s4, 76
      %v1992 = vld [vmem:[%s1991] sm:$0xf]
      %v1994 = vsel %vm379, %v1983, 0
      %v1997 = vsel %vm379, %v1984, 0
      %v2000 = vsel %vm379, %v1985, 0
      %v2003 = vsel %vm379, %v1986, 0
      %v2006 = vsel %vm379, %v1987, 0
      %v2009 = vsel %vm379, %v1988, 0
      %v2012 = vsel %vm379, %v1989, 0
      %v2015 = vsel %vm379, %v1990, 0
      %v2018 = vsel %vm404, %v1992, 0
      %2020 = vmatpush.msra.mxu0 0.0
      %2021 = vmatpush.msra.mxu0 0.0
      %2022 = vmatpush.msra.mxu0 0.0
      %2023 = vmatpush.msra.mxu0 0.0
      %2024 = vmatpush.msra.mxu0 0.0
      %2025 = vmatpush.msra.mxu0 0.0
      %2026 = vmatpush.msra.mxu0 0.0
      %2027 = vmatpush.msra.mxu0 0.0
      %2028 = vmatpush.msra.mxu0 0.0
      %2029 = vmatpush.msra.mxu0 0.0
      %2030 = vmatpush.msra.mxu0 0.0
      %2031 = vmatpush.msra.mxu0 0.0
      %2032 = vmatpush.msra.mxu0 0.0
      %2033 = vmatpush.msra.mxu0 0.0
      %2034 = vmatpush.msra.mxu0 0.0
      %2035 = vmatpush.msra.mxu0 %v2018
      %2036 = vmatmul.f32.gmra.mxu0 %v1994
      %v2037 = vpop.f32.mrf.mxu0
      %v2038 = vadd.f32 0.0, %v2037
      %2039 = vmatmul.f32.gmra.mxu0 %v1997
      %v2040 = vpop.f32.mrf.mxu0
      %v2041 = vadd.f32 0.0, %v2040
      %2042 = vmatmul.f32.gmra.mxu0 %v2000
      %v2043 = vpop.f32.mrf.mxu0
      %v2044 = vadd.f32 0.0, %v2043
      %2045 = vmatmul.f32.gmra.mxu0 %v2003
      %v2046 = vpop.f32.mrf.mxu0
      %v2047 = vadd.f32 0.0, %v2046
      %2048 = vmatmul.f32.gmra.mxu0 %v2006
      %v2049 = vpop.f32.mrf.mxu0
      %v2050 = vadd.f32 0.0, %v2049
      %2051 = vmatmul.f32.gmra.mxu0 %v2009
      %v2052 = vpop.f32.mrf.mxu0
      %v2053 = vadd.f32 0.0, %v2052
      %2054 = vmatmul.f32.gmra.mxu0 %v2012
      %v2055 = vpop.f32.mrf.mxu0
      %v2056 = vadd.f32 0.0, %v2055
      %2057 = vmatmul.f32.gmra.mxu0 %v2015
      %v2058 = vpop.f32.mrf.mxu0
      %v2059 = vadd.f32 0.0, %v2058
      %2060 = vdwg.mxu0
      %v2061 = vadd.f32 %v1975, %v2038
      %v2062 = vadd.f32 %v1976, %v2041
      %v2063 = vadd.f32 %v1977, %v2044
      %v2064 = vadd.f32 %v1978, %v2047
      %v2065 = vadd.f32 %v1979, %v2050
      %v2066 = vadd.f32 %v1980, %v2053
      %v2067 = vadd.f32 %v1981, %v2056
      %v2068 = vadd.f32 %v1982, %v2059
      %s2069 = scalar_lea.vmem %s331, 32
      %v2070 = vld [vmem:[%s2069] sm:$0xff]
      %v2071 = vld [vmem:[%s2069 + $0x10] sm:$0xff]
      %v2072 = vld [vmem:[%s2069 + $0x20] sm:$0xff]
      %v2073 = vld [vmem:[%s2069 + $0x30] sm:$0xff]
      %v2074 = vld [vmem:[%s2069 + $0x40] sm:$0xff]
      %v2075 = vld [vmem:[%s2069 + $0x50] sm:$0xff]
      %v2076 = vld [vmem:[%s2069 + $0x60] sm:$0xff]
      %v2077 = vld [vmem:[%s2069 + $0x70] sm:$0xff]
      %s2078 = scalar_lea.vmem %s4, 80
      %v2079 = vld [vmem:[%s2078] sm:$0xf]
      %v2081 = vsel %vm379, %v2070, 0
      %v2084 = vsel %vm379, %v2071, 0
      %v2087 = vsel %vm379, %v2072, 0
      %v2090 = vsel %vm379, %v2073, 0
      %v2093 = vsel %vm379, %v2074, 0
      %v2096 = vsel %vm379, %v2075, 0
      %v2099 = vsel %vm379, %v2076, 0
      %v2102 = vsel %vm379, %v2077, 0
      %v2105 = vsel %vm404, %v2079, 0
      %2107 = vmatpush.msra.mxu0 0.0
      %2108 = vmatpush.msra.mxu0 0.0
      %2109 = vmatpush.msra.mxu0 0.0
      %2110 = vmatpush.msra.mxu0 0.0
      %2111 = vmatpush.msra.mxu0 0.0
      %2112 = vmatpush.msra.mxu0 0.0
      %2113 = vmatpush.msra.mxu0 0.0
      %2114 = vmatpush.msra.mxu0 0.0
      %2115 = vmatpush.msra.mxu0 0.0
      %2116 = vmatpush.msra.mxu0 0.0
      %2117 = vmatpush.msra.mxu0 0.0
      %2118 = vmatpush.msra.mxu0 0.0
      %2119 = vmatpush.msra.mxu0 0.0
      %2120 = vmatpush.msra.mxu0 0.0
      %2121 = vmatpush.msra.mxu0 0.0
      %2122 = vmatpush.msra.mxu0 %v2105
      %2123 = vmatmul.f32.gmra.mxu0 %v2081
      %v2124 = vpop.f32.mrf.mxu0
      %v2125 = vadd.f32 0.0, %v2124
      %2126 = vmatmul.f32.gmra.mxu0 %v2084
      %v2127 = vpop.f32.mrf.mxu0
      %v2128 = vadd.f32 0.0, %v2127
      %2129 = vmatmul.f32.gmra.mxu0 %v2087
      %v2130 = vpop.f32.mrf.mxu0
      %v2131 = vadd.f32 0.0, %v2130
      %2132 = vmatmul.f32.gmra.mxu0 %v2090
      %v2133 = vpop.f32.mrf.mxu0
      %v2134 = vadd.f32 0.0, %v2133
      %2135 = vmatmul.f32.gmra.mxu0 %v2093
      %v2136 = vpop.f32.mrf.mxu0
      %v2137 = vadd.f32 0.0, %v2136
      %2138 = vmatmul.f32.gmra.mxu0 %v2096
      %v2139 = vpop.f32.mrf.mxu0
      %v2140 = vadd.f32 0.0, %v2139
      %2141 = vmatmul.f32.gmra.mxu0 %v2099
      %v2142 = vpop.f32.mrf.mxu0
      %v2143 = vadd.f32 0.0, %v2142
      %2144 = vmatmul.f32.gmra.mxu0 %v2102
      %v2145 = vpop.f32.mrf.mxu0
      %v2146 = vadd.f32 0.0, %v2145
      %2147 = vdwg.mxu0
      %v2148 = vadd.f32 %v2061, %v2125
      %v2149 = vadd.f32 %v2062, %v2128
      %v2150 = vadd.f32 %v2063, %v2131
      %v2151 = vadd.f32 %v2064, %v2134
      %v2152 = vadd.f32 %v2065, %v2137
      %v2153 = vadd.f32 %v2066, %v2140
      %v2154 = vadd.f32 %v2067, %v2143
      %v2155 = vadd.f32 %v2068, %v2146
      %s2156 = scalar_lea.vmem %s336, 32
      %v2157 = vld [vmem:[%s2156] sm:$0xff]
      %v2158 = vld [vmem:[%s2156 + $0x10] sm:$0xff]
      %v2159 = vld [vmem:[%s2156 + $0x20] sm:$0xff]
      %v2160 = vld [vmem:[%s2156 + $0x30] sm:$0xff]
      %v2161 = vld [vmem:[%s2156 + $0x40] sm:$0xff]
      %v2162 = vld [vmem:[%s2156 + $0x50] sm:$0xff]
      %v2163 = vld [vmem:[%s2156 + $0x60] sm:$0xff]
      %v2164 = vld [vmem:[%s2156 + $0x70] sm:$0xff]
      %s2165 = scalar_lea.vmem %s4, 84
      %v2166 = vld [vmem:[%s2165] sm:$0xf]
      %v2168 = vsel %vm379, %v2157, 0
      %v2171 = vsel %vm379, %v2158, 0
      %v2174 = vsel %vm379, %v2159, 0
      %v2177 = vsel %vm379, %v2160, 0
      %v2180 = vsel %vm379, %v2161, 0
      %v2183 = vsel %vm379, %v2162, 0
      %v2186 = vsel %vm379, %v2163, 0
      %v2189 = vsel %vm379, %v2164, 0
      %v2192 = vsel %vm404, %v2166, 0
      %2194 = vmatpush.msra.mxu0 0.0
      %2195 = vmatpush.msra.mxu0 0.0
      %2196 = vmatpush.msra.mxu0 0.0
      %2197 = vmatpush.msra.mxu0 0.0
      %2198 = vmatpush.msra.mxu0 0.0
      %2199 = vmatpush.msra.mxu0 0.0
      %2200 = vmatpush.msra.mxu0 0.0
      %2201 = vmatpush.msra.mxu0 0.0
      %2202 = vmatpush.msra.mxu0 0.0
      %2203 = vmatpush.msra.mxu0 0.0
      %2204 = vmatpush.msra.mxu0 0.0
      %2205 = vmatpush.msra.mxu0 0.0
      %2206 = vmatpush.msra.mxu0 0.0
      %2207 = vmatpush.msra.mxu0 0.0
      %2208 = vmatpush.msra.mxu0 0.0
      %2209 = vmatpush.msra.mxu0 %v2192
      %2210 = vmatmul.f32.gmra.mxu0 %v2168
      %v2211 = vpop.f32.mrf.mxu0
      %v2212 = vadd.f32 0.0, %v2211
      %2213 = vmatmul.f32.gmra.mxu0 %v2171
      %v2214 = vpop.f32.mrf.mxu0
      %v2215 = vadd.f32 0.0, %v2214
      %2216 = vmatmul.f32.gmra.mxu0 %v2174
      %v2217 = vpop.f32.mrf.mxu0
      %v2218 = vadd.f32 0.0, %v2217
      %2219 = vmatmul.f32.gmra.mxu0 %v2177
      %v2220 = vpop.f32.mrf.mxu0
      %v2221 = vadd.f32 0.0, %v2220
      %2222 = vmatmul.f32.gmra.mxu0 %v2180
      %v2223 = vpop.f32.mrf.mxu0
      %v2224 = vadd.f32 0.0, %v2223
      %2225 = vmatmul.f32.gmra.mxu0 %v2183
      %v2226 = vpop.f32.mrf.mxu0
      %v2227 = vadd.f32 0.0, %v2226
      %2228 = vmatmul.f32.gmra.mxu0 %v2186
      %v2229 = vpop.f32.mrf.mxu0
      %v2230 = vadd.f32 0.0, %v2229
      %2231 = vmatmul.f32.gmra.mxu0 %v2189
      %v2232 = vpop.f32.mrf.mxu0
      %v2233 = vadd.f32 0.0, %v2232
      %2234 = vdwg.mxu0
      %v2235 = vadd.f32 %v2148, %v2212
      %v2236 = vadd.f32 %v2149, %v2215
      %v2237 = vadd.f32 %v2150, %v2218
      %v2238 = vadd.f32 %v2151, %v2221
      %v2239 = vadd.f32 %v2152, %v2224
      %v2240 = vadd.f32 %v2153, %v2227
      %v2241 = vadd.f32 %v2154, %v2230
      %v2242 = vadd.f32 %v2155, %v2233
      %v2243 = vld [vmem:[%s2069 + $0x1] sm:$0xff]
      %v2244 = vld [vmem:[%s2069 + $0x11] sm:$0xff]
      %v2245 = vld [vmem:[%s2069 + $0x21] sm:$0xff]
      %v2246 = vld [vmem:[%s2069 + $0x31] sm:$0xff]
      %v2247 = vld [vmem:[%s2069 + $0x41] sm:$0xff]
      %v2248 = vld [vmem:[%s2069 + $0x51] sm:$0xff]
      %v2249 = vld [vmem:[%s2069 + $0x61] sm:$0xff]
      %v2250 = vld [vmem:[%s2069 + $0x71] sm:$0xff]
      %s2251 = scalar_lea.vmem %s4, 88
      %v2252 = vld [vmem:[%s2251] sm:$0xf]
      %v2254 = vsel %vm379, %v2243, 0
      %v2257 = vsel %vm379, %v2244, 0
      %v2260 = vsel %vm379, %v2245, 0
      %v2263 = vsel %vm379, %v2246, 0
      %v2266 = vsel %vm379, %v2247, 0
      %v2269 = vsel %vm379, %v2248, 0
      %v2272 = vsel %vm379, %v2249, 0
      %v2275 = vsel %vm379, %v2250, 0
      %v2278 = vsel %vm404, %v2252, 0
      %2280 = vmatpush.msra.mxu0 0.0
      %2281 = vmatpush.msra.mxu0 0.0
      %2282 = vmatpush.msra.mxu0 0.0
      %2283 = vmatpush.msra.mxu0 0.0
      %2284 = vmatpush.msra.mxu0 0.0
      %2285 = vmatpush.msra.mxu0 0.0
      %2286 = vmatpush.msra.mxu0 0.0
      %2287 = vmatpush.msra.mxu0 0.0
      %2288 = vmatpush.msra.mxu0 0.0
      %2289 = vmatpush.msra.mxu0 0.0
      %2290 = vmatpush.msra.mxu0 0.0
      %2291 = vmatpush.msra.mxu0 0.0
      %2292 = vmatpush.msra.mxu0 0.0
      %2293 = vmatpush.msra.mxu0 0.0
      %2294 = vmatpush.msra.mxu0 0.0
      %2295 = vmatpush.msra.mxu0 %v2278
      %2296 = vmatmul.f32.gmra.mxu0 %v2254
      %v2297 = vpop.f32.mrf.mxu0
      %v2298 = vadd.f32 0.0, %v2297
      %2299 = vmatmul.f32.gmra.mxu0 %v2257
      %v2300 = vpop.f32.mrf.mxu0
      %v2301 = vadd.f32 0.0, %v2300
      %2302 = vmatmul.f32.gmra.mxu0 %v2260
      %v2303 = vpop.f32.mrf.mxu0
      %v2304 = vadd.f32 0.0, %v2303
      %2305 = vmatmul.f32.gmra.mxu0 %v2263
      %v2306 = vpop.f32.mrf.mxu0
      %v2307 = vadd.f32 0.0, %v2306
      %2308 = vmatmul.f32.gmra.mxu0 %v2266
      %v2309 = vpop.f32.mrf.mxu0
      %v2310 = vadd.f32 0.0, %v2309
      %2311 = vmatmul.f32.gmra.mxu0 %v2269
      %v2312 = vpop.f32.mrf.mxu0
      %v2313 = vadd.f32 0.0, %v2312
      %2314 = vmatmul.f32.gmra.mxu0 %v2272
      %v2315 = vpop.f32.mrf.mxu0
      %v2316 = vadd.f32 0.0, %v2315
      %2317 = vmatmul.f32.gmra.mxu0 %v2275
      %v2318 = vpop.f32.mrf.mxu0
      %v2319 = vadd.f32 0.0, %v2318
      %2320 = vdwg.mxu0
      %v2321 = vadd.f32 %v2235, %v2298
      %v2322 = vadd.f32 %v2236, %v2301
      %v2323 = vadd.f32 %v2237, %v2304
      %v2324 = vadd.f32 %v2238, %v2307
      %v2325 = vadd.f32 %v2239, %v2310
      %v2326 = vadd.f32 %v2240, %v2313
      %v2327 = vadd.f32 %v2241, %v2316
      %v2328 = vadd.f32 %v2242, %v2319
      %v2329 = vld [vmem:[%s2156 + $0x1] sm:$0xff]
      %v2330 = vld [vmem:[%s2156 + $0x11] sm:$0xff]
      %v2331 = vld [vmem:[%s2156 + $0x21] sm:$0xff]
      %v2332 = vld [vmem:[%s2156 + $0x31] sm:$0xff]
      %v2333 = vld [vmem:[%s2156 + $0x41] sm:$0xff]
      %v2334 = vld [vmem:[%s2156 + $0x51] sm:$0xff]
      %v2335 = vld [vmem:[%s2156 + $0x61] sm:$0xff]
      %v2336 = vld [vmem:[%s2156 + $0x71] sm:$0xff]
      %s2337 = scalar_lea.vmem %s4, 92
      %v2338 = vld [vmem:[%s2337] sm:$0xf]
      %v2340 = vsel %vm379, %v2329, 0
      %v2343 = vsel %vm379, %v2330, 0
      %v2346 = vsel %vm379, %v2331, 0
      %v2349 = vsel %vm379, %v2332, 0
      %v2352 = vsel %vm379, %v2333, 0
      %v2355 = vsel %vm379, %v2334, 0
      %v2358 = vsel %vm379, %v2335, 0
      %v2361 = vsel %vm379, %v2336, 0
      %v2364 = vsel %vm404, %v2338, 0
      %2366 = vmatpush.msra.mxu0 0.0
      %2367 = vmatpush.msra.mxu0 0.0
      %2368 = vmatpush.msra.mxu0 0.0
      %2369 = vmatpush.msra.mxu0 0.0
      %2370 = vmatpush.msra.mxu0 0.0
      %2371 = vmatpush.msra.mxu0 0.0
      %2372 = vmatpush.msra.mxu0 0.0
      %2373 = vmatpush.msra.mxu0 0.0
      %2374 = vmatpush.msra.mxu0 0.0
      %2375 = vmatpush.msra.mxu0 0.0
      %2376 = vmatpush.msra.mxu0 0.0
      %2377 = vmatpush.msra.mxu0 0.0
      %2378 = vmatpush.msra.mxu0 0.0
      %2379 = vmatpush.msra.mxu0 0.0
      %2380 = vmatpush.msra.mxu0 0.0
      %2381 = vmatpush.msra.mxu0 %v2364
      %2382 = vmatmul.f32.gmra.mxu0 %v2340
      %v2383 = vpop.f32.mrf.mxu0
      %v2384 = vadd.f32 0.0, %v2383
      %2385 = vmatmul.f32.gmra.mxu0 %v2343
      %v2386 = vpop.f32.mrf.mxu0
      %v2387 = vadd.f32 0.0, %v2386
      %2388 = vmatmul.f32.gmra.mxu0 %v2346
      %v2389 = vpop.f32.mrf.mxu0
      %v2390 = vadd.f32 0.0, %v2389
      %2391 = vmatmul.f32.gmra.mxu0 %v2349
      %v2392 = vpop.f32.mrf.mxu0
      %v2393 = vadd.f32 0.0, %v2392
      %2394 = vmatmul.f32.gmra.mxu0 %v2352
      %v2395 = vpop.f32.mrf.mxu0
      %v2396 = vadd.f32 0.0, %v2395
      %2397 = vmatmul.f32.gmra.mxu0 %v2355
      %v2398 = vpop.f32.mrf.mxu0
      %v2399 = vadd.f32 0.0, %v2398
      %2400 = vmatmul.f32.gmra.mxu0 %v2358
      %v2401 = vpop.f32.mrf.mxu0
      %v2402 = vadd.f32 0.0, %v2401
      %2403 = vmatmul.f32.gmra.mxu0 %v2361
      %v2404 = vpop.f32.mrf.mxu0
      %v2405 = vadd.f32 0.0, %v2404
      %2406 = vdwg.mxu0
      %v2407 = vadd.f32 %v2321, %v2384
      %v2408 = vadd.f32 %v2322, %v2387
      %v2409 = vadd.f32 %v2323, %v2390
      %v2410 = vadd.f32 %v2324, %v2393
      %v2411 = vadd.f32 %v2325, %v2396
      %v2412 = vadd.f32 %v2326, %v2399
      %v2413 = vadd.f32 %v2327, %v2402
      %v2414 = vadd.f32 %v2328, %v2405
      %v2415 = vld [vmem:[%s2069 + $0x2] sm:$0xff]
      %v2416 = vld [vmem:[%s2069 + $0x12] sm:$0xff]
      %v2417 = vld [vmem:[%s2069 + $0x22] sm:$0xff]
      %v2418 = vld [vmem:[%s2069 + $0x32] sm:$0xff]
      %v2419 = vld [vmem:[%s2069 + $0x42] sm:$0xff]
      %v2420 = vld [vmem:[%s2069 + $0x52] sm:$0xff]
      %v2421 = vld [vmem:[%s2069 + $0x62] sm:$0xff]
      %v2422 = vld [vmem:[%s2069 + $0x72] sm:$0xff]
      %s2423 = scalar_lea.vmem %s4, 96
      %v2424 = vld [vmem:[%s2423] sm:$0xf]
      %v2426 = vsel %vm379, %v2415, 0
      %v2429 = vsel %vm379, %v2416, 0
      %v2432 = vsel %vm379, %v2417, 0
      %v2435 = vsel %vm379, %v2418, 0
      %v2438 = vsel %vm379, %v2419, 0
      %v2441 = vsel %vm379, %v2420, 0
      %v2444 = vsel %vm379, %v2421, 0
      %v2447 = vsel %vm379, %v2422, 0
      %v2450 = vsel %vm404, %v2424, 0
      %2452 = vmatpush.msra.mxu0 0.0
      %2453 = vmatpush.msra.mxu0 0.0
      %2454 = vmatpush.msra.mxu0 0.0
      %2455 = vmatpush.msra.mxu0 0.0
      %2456 = vmatpush.msra.mxu0 0.0
      %2457 = vmatpush.msra.mxu0 0.0
      %2458 = vmatpush.msra.mxu0 0.0
      %2459 = vmatpush.msra.mxu0 0.0
      %2460 = vmatpush.msra.mxu0 0.0
      %2461 = vmatpush.msra.mxu0 0.0
      %2462 = vmatpush.msra.mxu0 0.0
      %2463 = vmatpush.msra.mxu0 0.0
      %2464 = vmatpush.msra.mxu0 0.0
      %2465 = vmatpush.msra.mxu0 0.0
      %2466 = vmatpush.msra.mxu0 0.0
      %2467 = vmatpush.msra.mxu0 %v2450
      %2468 = vmatmul.f32.gmra.mxu0 %v2426
      %v2469 = vpop.f32.mrf.mxu0
      %v2470 = vadd.f32 0.0, %v2469
      %2471 = vmatmul.f32.gmra.mxu0 %v2429
      %v2472 = vpop.f32.mrf.mxu0
      %v2473 = vadd.f32 0.0, %v2472
      %2474 = vmatmul.f32.gmra.mxu0 %v2432
      %v2475 = vpop.f32.mrf.mxu0
      %v2476 = vadd.f32 0.0, %v2475
      %2477 = vmatmul.f32.gmra.mxu0 %v2435
      %v2478 = vpop.f32.mrf.mxu0
      %v2479 = vadd.f32 0.0, %v2478
      %2480 = vmatmul.f32.gmra.mxu0 %v2438
      %v2481 = vpop.f32.mrf.mxu0
      %v2482 = vadd.f32 0.0, %v2481
      %2483 = vmatmul.f32.gmra.mxu0 %v2441
      %v2484 = vpop.f32.mrf.mxu0
      %v2485 = vadd.f32 0.0, %v2484
      %2486 = vmatmul.f32.gmra.mxu0 %v2444
      %v2487 = vpop.f32.mrf.mxu0
      %v2488 = vadd.f32 0.0, %v2487
      %2489 = vmatmul.f32.gmra.mxu0 %v2447
      %v2490 = vpop.f32.mrf.mxu0
      %v2491 = vadd.f32 0.0, %v2490
      %2492 = vdwg.mxu0
      %v2493 = vadd.f32 %v2407, %v2470
      %v2494 = vadd.f32 %v2408, %v2473
      %v2495 = vadd.f32 %v2409, %v2476
      %v2496 = vadd.f32 %v2410, %v2479
      %v2497 = vadd.f32 %v2411, %v2482
      %v2498 = vadd.f32 %v2412, %v2485
      %v2499 = vadd.f32 %v2413, %v2488
      %v2500 = vadd.f32 %v2414, %v2491
      %v2501 = vpack.c.bf16 %v2493, %v2493
      %v2502 = vpack.c.bf16 %v2494, %v2494
      %v2503 = vpack.c.bf16 %v2495, %v2495
      %v2504 = vpack.c.bf16 %v2496, %v2496
      %v2505 = vpack.c.bf16 %v2497, %v2497
      %v2506 = vpack.c.bf16 %v2498, %v2498
      %v2507 = vpack.c.bf16 %v2499, %v2499
      %v2508 = vpack.c.bf16 %v2500, %v2500
      %2509 = vst [vmem:[%s351] sm:$0xf] %v2501
      %2510 = vst [vmem:[%s351 + $0x4] sm:$0xf] %v2502
      %2511 = vst [vmem:[%s351 + $0x8] sm:$0xf] %v2503
      %2512 = vst [vmem:[%s351 + $0xc] sm:$0xf] %v2504
      %2513 = vst [vmem:[%s351 + $0x10] sm:$0xf] %v2505
      %2514 = vst [vmem:[%s351 + $0x14] sm:$0xf] %v2506
      %2515 = vst [vmem:[%s351 + $0x18] sm:$0xf] %v2507
      %2516 = vst [vmem:[%s351 + $0x1c] sm:$0xf] %v2508
      %v2517 = vadd.f32 %v2493, %v2494
      %v2518 = vadd.f32 %v2517, %v2495
      %v2519 = vadd.f32 %v2518, %v2496
      %v2520 = vadd.f32 %v2519, %v2497
      %v2521 = vadd.f32 %v2520, %v2498
      %v2522 = vadd.f32 %v2521, %v2499
      %v2523 = vadd.f32 %v2522, %v2500
      %v2524 = vrot.slane %v2523, 4
      %v2525 = vadd.f32 %v2523, %v2524
      %v2526 = vrot.slane %v2525, 2
      %v2527 = vadd.f32 %v2525, %v2526
      %v2528 = vrot.slane %v2527, 1
      %v2529 = vadd.f32 %v2527, %v2528
      %2530 = vst [vmem:[%s355] sm:$0xff] %v2529
      %v2531 = vmul.f32 %v2493, %v2493
      %v2532 = vmul.f32 %v2494, %v2494
      %v2533 = vmul.f32 %v2495, %v2495
      %v2534 = vmul.f32 %v2496, %v2496
      %v2535 = vmul.f32 %v2497, %v2497
      %v2536 = vmul.f32 %v2498, %v2498
      %v2537 = vmul.f32 %v2499, %v2499
      %v2538 = vmul.f32 %v2500, %v2500
      %v2539 = vadd.f32 %v2531, %v2532
      %v2540 = vadd.f32 %v2539, %v2533
      %v2541 = vadd.f32 %v2540, %v2534
      %v2542 = vadd.f32 %v2541, %v2535
      %v2543 = vadd.f32 %v2542, %v2536
      %v2544 = vadd.f32 %v2543, %v2537
      %v2545 = vadd.f32 %v2544, %v2538
      %v2546 = vrot.slane %v2545, 4
      %v2547 = vadd.f32 %v2545, %v2546
      %v2548 = vrot.slane %v2547, 2
      %v2549 = vadd.f32 %v2547, %v2548
      %v2550 = vrot.slane %v2549, 1
      %v2551 = vadd.f32 %v2549, %v2550
      %2552 = vst [vmem:[%s359] sm:$0xff] %v2551
      %p2553 = scmp.lt.s32.totalorder %s19, 1
      %s2554 = scalar_select %p2553, %s19, 1
      %s2555 = smul.addr %s2554, 8
      %s2556 = smul.addr %s2555, 4
      %s2557 = scalar_lea.vmem %s5, %s2556
      %p2558 = scmp.lt.s32.totalorder %s19, 1
      %s2559 = scalar_select %p2558, %s19, 1
      %s2560 = smul.addr %s2559, 8
      %s2561 = scalar_lea.vmem %s6, %s2560
      %p2562 = scmp.lt.s32.totalorder %s19, 1
      %s2563 = scalar_select %p2562, %s19, 1
      %s2564 = smul.addr %s2563, 8
      %s2565 = scalar_lea.vmem %s7, %s2564
      // Predicated region
      $region41: #{encoder_layer.2} parent=39 // pred_check
        %p2566 = pneg %p162
      $region42: #{encoder_layer.2} parent=39 // pred_check_branch
        %2568 = sbr.rel (%p2566) target = $region44
      $region43: #{encoder_layer.2} parent=39 // pred_region
        _
      $region44: #{encoder_layer.2} parent=39 // pred_fallthru
        _
      // Predicated region
      $region45: #{encoder_layer.2} parent=39 // pred_check
        %p2569 = pneg %p188
      $region46: #{encoder_layer.2} parent=39 // pred_check_branch
        %2571 = sbr.rel (%p2569) target = $region48
      $region47: #{encoder_layer.2} parent=39 // pred_region
        _
      $region48: #{encoder_layer.2} parent=39 // pred_fallthru
        _
      // Predicated region
      $region49: #{encoder_layer.2} parent=39 // pred_check
        %p2572 = pneg %p214
      $region50: #{encoder_layer.2} parent=39 // pred_check_branch
        %2574 = sbr.rel (%p2572) target = $region52
      $region51: #{encoder_layer.2} parent=39 // pred_region
        _
      $region52: #{encoder_layer.2} parent=39 // pred_fallthru
        _
    $region40: #{encoder_layer.2} parent=5 // pred_fallthru
      _
    %p2575 = scmp.le.s32.totalorder 2, %s14
    // Predicated region
    $region53: #{encoder_layer.2} parent=5 // pred_check
      %p2576 = pneg %p2575
    $region54: #{encoder_layer.2} parent=5 // pred_check_branch
      %2578 = sbr.rel (%p2576) target = $region56
    $region55: #{encoder_layer.2} parent=5 // pred_region
      %s2579 = ssub.s32 %s14, 2
      // Predicated region
      $region57: #{encoder_layer.2} parent=55 // pred_check
        %p2580 = pneg %p168
      $region58: #{encoder_layer.2} parent=55 // pred_check_branch
        %2582 = sbr.rel (%p2580) target = $region60
      $region59: #{encoder_layer.2} parent=55 // pred_region
        %p2583 = scmp.lt.s32.totalorder %s20, 1
        %s2584 = scalar_select %p2583, %s20, 1
        %s2585 = smul.addr %s2584, 8
        %s2586 = smul.addr %s2585, 4
        %s2587 = scalar_lea.vmem %s5, %s2586
      $region60: #{encoder_layer.2} parent=55 // pred_fallthru
        _
      // Predicated region
      $region61: #{encoder_layer.2} parent=55 // pred_check
        %p2588 = pneg %p194
      $region62: #{encoder_layer.2} parent=55 // pred_check_branch
        %2590 = sbr.rel (%p2588) target = $region64
      $region63: #{encoder_layer.2} parent=55 // pred_region
        %p2591 = scmp.lt.s32.totalorder %s20, 1
        %s2592 = scalar_select %p2591, %s20, 1
        %s2593 = smul.addr %s2592, 8
        %s2594 = scalar_lea.vmem %s6, %s2593
      $region64: #{encoder_layer.2} parent=55 // pred_fallthru
        _
      // Predicated region
      $region65: #{encoder_layer.2} parent=55 // pred_check
        %p2595 = pneg %p220
      $region66: #{encoder_layer.2} parent=55 // pred_check_branch
        %2597 = sbr.rel (%p2595) target = $region68
      $region67: #{encoder_layer.2} parent=55 // pred_region
        %p2598 = scmp.lt.s32.totalorder %s20, 1
        %s2599 = scalar_select %p2598, %s20, 1
        %s2600 = smul.addr %s2599, 8
        %s2601 = scalar_lea.vmem %s7, %s2600
      $region68: #{encoder_layer.2} parent=55 // pred_fallthru
        _
    $region56: #{encoder_layer.2} parent=5 // pred_fallthru
      _
  $region6: #{encoder_layer.2} parent=0 // loop_footer
    %s18 = sadd.s32 1, %s14
  $region7: #{encoder_layer.2} parent=0 // loop_footer_branch
    %13 = sbr.rel target = $region3
  $region8: #{encoder_layer.2} parent=0 // loop_exit
    _

</llo_original>
